<compile_context>
chip_gen: v7x
topology: tpu7x:2x2x1
jax: 0.10.0
libtpu: 0.0.40
codegen_flags: <defaults>
</compile_context>

<pallas_src>
import jax
import jax.numpy as jnp
from jax import lax
from jax.experimental import pallas as pl
from jax.experimental.pallas import tpu as pltpu

EPS = 1e-5          # InstanceNorm eps (PyTorch default)
NEG_SLOPE = 0.1     # LeakyReLU negative slope (MONAI BasicUNet default act)
_LANE = 128
_F32 = 4


def _rup(x, m):
    return ((x + m - 1) // m) * m


def _vmem_caps():
    """(per-step tile budget, scoped vmem limit) for this TPU generation."""
    try:
        cap = pltpu.get_tpu_info().vmem_capacity_bytes
    except Exception:
        cap = 64 * 1024 * 1024
    if cap >= 100 * 1024 * 1024:                       # v5e / v6e: 128 MiB / core
        return 64 * 1024 * 1024, 100 * 1024 * 1024
    return 24 * 1024 * 1024, 48 * 1024 * 1024          # v7x: 64 MiB / core


def _pick_rows(h, per_row_bytes, budget, force=None):
    """Largest divisor of h that is a multiple of 8 (or h itself) fitting budget."""
    cands = [d for d in range(1, h + 1) if h % d == 0 and (d % 8 == 0 or d == h)]
    if force is not None:
        small = [d for d in cands if d <= force]
        if small:
            return max(small)
    fit = [d for d in cands if d * per_row_bytes <= budget]
    return max(fit) if fit else min(cands)


# ----------------------------------------------------------------------------
# Kernel 1: ConvTranspose2d(kernel=2, stride=2).  One wide MXU matmul per row
# tile; the 2x interleave is written straight into a lane-dense output block
# (N, H, 2, 2W*Cup) which is a pure reshape-view of (N, 2H, 2W, Cup).
# ----------------------------------------------------------------------------
def _make_deconv_kernel(th, w, cup):
    c2 = 2 * cup

    def kernel(x_ref, w_ref, b_ref, o_ref):
        cin = x_ref.shape[-1]
        xv = x_ref[0].reshape(th * w, cin)
        y = jnp.dot(xv, w_ref[...], preferred_element_type=jnp.float32)
        y = y + b_ref[...]
        y3 = y.reshape(th, w, 4 * cup)                 # cols ordered (dh, dw, d)
        for dh in range(2):
            src = y3[:, :, dh * c2:(dh + 1) * c2]      # (th, w, 2*cup)
            for j in range(w):
                o_ref[0, :, dh, j * c2:(j + 1) * c2] = src[:, j, :]
    return kernel


def deconv2x2_s2(x_nhwc, wker, b, row_tile=None):
    """x: (N,H,W,Cin), wker: (2,2,Cin,Cup) [(dh,dw,c,d)], b: (1,Cup) -> (N,2H,2W,Cup)."""
    n, h, wdt, cin = x_nhwc.shape
    cup = wker.shape[-1]
    w4 = jnp.transpose(wker, (2, 0, 1, 3)).reshape(cin, 4 * cup)
    b4 = jnp.tile(b, (1, 4))

    budget, limit = _vmem_caps()
    per_row = (2 * _rup(wdt, 8) * _LANE * _F32          # double-buffered input block
               + 2 * _rup(wdt, 8) * _LANE * _F32        # f32 matmul result / spills
               + 2 * 2 * 2 * wdt * cup * _F32)          # lane-dense output block x2
    th = _pick_rows(h, per_row, budget, row_tile)

    out = pl.pallas_call(
        _make_deconv_kernel(th, wdt, cup),
        out_shape=jax.ShapeDtypeStruct((n, h, 2, 2 * wdt * cup), jnp.float32),
        grid=(n, h // th),
        in_specs=[
            pl.BlockSpec((1, th, wdt, cin), lambda i, t: (i, t, 0, 0)),
            pl.BlockSpec((cin, 4 * cup), lambda i, t: (0, 0)),
            pl.BlockSpec((1, 4 * cup), lambda i, t: (0, 0)),
        ],
        out_specs=pl.BlockSpec((1, th, 2, 2 * wdt * cup), lambda i, t: (i, t, 0, 0)),
        compiler_params=pltpu.CompilerParams(
            dimension_semantics=("parallel", "parallel"),
            vmem_limit_bytes=limit),
    )(x_nhwc, w4, b4)
    return out.reshape(n, 2 * h, 2 * wdt, cup)          # free view


# ----------------------------------------------------------------------------
# Kernel 2: Conv3x3 (+bias) with in-kernel zero padding, double-buffered manual
# halo DMA, optional fused input InstanceNorm+LeakyReLU (previous layer's), and
# per-tile InstanceNorm partial sums.  Channel concat is fused by taking
# several HBM inputs with per-input weight slabs.
# ----------------------------------------------------------------------------
def _make_conv_kernel(n_in, th, w, h, fuse_norm):
    taps = [(dh, dw) for dh in range(3) for dw in range(3)]

    def kernel(*refs):
        pos = 0
        x_hbm = refs[pos:pos + n_in]; pos += n_in
        if fuse_norm:
            sc_ref, sh_ref = refs[pos], refs[pos + 1]; pos += 2
        wt_refs = refs[pos:pos + n_in]; pos += n_in
        b_ref = refs[pos]; pos += 1
        y_ref, st_ref = refs[pos], refs[pos + 1]; pos += 2
        bufs = refs[pos:pos + n_in]; pos += n_in
        sem = refs[pos]

        i = pl.program_id(0)
        t = pl.program_id(1)
        nt = pl.num_programs(1)
        slot = t % 2
        nxt = (t + 1) % 2

        def copies(tile, s):
            row0 = tile * th
            top = jnp.maximum(row0 - 1, 0)
            bot = jnp.minimum(row0 + th, h - 1)
            cps = []
            for k in range(n_in):
                cps.append(pltpu.make_async_copy(
                    x_hbm[k].at[i, pl.ds(top, 1)],
                    bufs[k].at[s, pl.ds(0, 1), pl.ds(1, w)],
                    sem.at[k, s, 0]))
                cps.append(pltpu.make_async_copy(
                    x_hbm[k].at[i, pl.ds(row0, th)],
                    bufs[k].at[s, pl.ds(1, th), pl.ds(1, w)],
                    sem.at[k, s, 1]))
                cps.append(pltpu.make_async_copy(
                    x_hbm[k].at[i, pl.ds(bot, 1)],
                    bufs[k].at[s, pl.ds(th + 1, 1), pl.ds(1, w)],
                    sem.at[k, s, 2]))
            return cps

        @pl.when(t == 0)                                  # prime tile 0
        def _():
            for c in copies(t, slot):
                c.start()

        @pl.when(t + 1 < nt)                              # prefetch next tile
        def _():
            for c in copies(t + 1, nxt):
                c.start()

        for c in copies(t, slot):                         # wait current tile
            c.wait()

        # validity mask implements the zero padding (borders + image top/bottom)
        row = lax.broadcasted_iota(jnp.int32, (th + 2, w + 2, 1), 0) + (t * th - 1)
        col = lax.broadcasted_iota(jnp.int32, (th + 2, w + 2, 1), 1)
        valid = (row >= 0) & (row < h) & (col >= 1) & (col <= w)

        cout = b_ref.shape[-1]
        acc = jnp.zeros((th * w, cout), jnp.float32)
        for k in range(n_in):
            v = bufs[k][slot]                             # (th+2, w+2, C_k) f32
            if fuse_norm:                                 # previous layer's IN + act
                v = v * sc_ref[0] + sh_ref[0]
                v = jnp.where(v >= 0, v, NEG_SLOPE * v)
            v = jnp.where(valid, v, 0.0)
            for ti, (dh, dw) in enumerate(taps):          # 9 accumulated matmuls
                tap = v[dh:dh + th, dw:dw + w, :].reshape(th * w, -1)
                acc = acc + jnp.dot(tap, wt_refs[k][ti],
                                    preferred_element_type=jnp.float32)
        acc = acc + b_ref[...]

        # per-tile InstanceNorm partials
        st_ref[0, 0, 0:1, :] = jnp.sum(acc, axis=0, keepdims=True)
        st_ref[0, 0, 1:2, :] = jnp.sum(acc * acc, axis=0, keepdims=True)

        # lane-dense store: (1, th, w*cout) output block
        acc3 = acc.reshape(th, w, cout)
        for j in range(w):
            y_ref[0, :, j * cout:(j + 1) * cout] = acc3[:, j, :]
    return kernel


def conv3x3_stats(xs, w9s, bias, prenorm=None, row_tile=None):
    """3x3 same-conv + bias over the (virtual) channel concat of `xs`.

    xs:   list of un-padded NHWC f32 inputs (same N,H,W).
    w9s:  per-input weight slabs, each (9, C_k, Cout), taps ordered (dh, dw).
    prenorm: optional (scale, shift), each (N,1,Cout): fused InstanceNorm+LeakyReLU
             applied to the (single) input right after its halo DMA.
    Returns (y lane-dense (N,H,W*Cout) un-normalised, stats (N,2,Cout) [sum,sumsq]).
    """
    n, h, w, _ = xs[0].shape
    cout = w9s[0].shape[-1]
    n_in = len(xs)
    budget, limit = _vmem_caps()
    per_row = (sum(2 * _rup(w + 2, 8) * _LANE * _F32 for _ in xs)   # halo slots (lane-padded)
               + _rup(w + 2, 8) * _LANE * _F32                      # masked value
               + 3 * w * _LANE * _F32                               # acc / tap spills
               + 2 * 2 * w * cout * _F32)                           # out block x2
    th = _pick_rows(h, per_row, budget, row_tile)
    nt = h // th

    in_specs = [pl.BlockSpec(memory_space=pl.ANY) for _ in xs]
    args = list(xs)
    if prenorm is not None:
        sc, sh = prenorm
        in_specs += [pl.BlockSpec((1, 1, cout), lambda i, t: (i, 0, 0)),
                     pl.BlockSpec((1, 1, cout), lambda i, t: (i, 0, 0))]
        args += [sc, sh]
    in_specs += [pl.BlockSpec(w9.shape, lambda i, t: (0, 0, 0)) for w9 in w9s]
    in_specs += [pl.BlockSpec((1, cout), lambda i, t: (0, 0))]
    args += list(w9s) + [bias]

    scratch = [pltpu.VMEM((2, th + 2, w + 2, x.shape[-1]), jnp.float32) for x in xs]
    scratch += [pltpu.SemaphoreType.DMA((n_in, 2, 3))]

    y, stats = pl.pallas_call(
        _make_conv_kernel(n_in, th, w, h, prenorm is not None),
        out_shape=(jax.ShapeDtypeStruct((n, h, w * cout), jnp.float32),
                   jax.ShapeDtypeStruct((n, nt, 2, cout), jnp.float32)),
        grid=(n, nt),
        in_specs=in_specs,
        out_specs=(pl.BlockSpec((1, th, w * cout), lambda i, t: (i, t, 0)),
                   pl.BlockSpec((1, 1, 2, cout), lambda i, t: (i, t, 0, 0))),
        scratch_shapes=scratch,
        compiler_params=pltpu.CompilerParams(
            dimension_semantics=("parallel", "arbitrary"),
            vmem_limit_bytes=limit),
    )(*args)
    return y, jnp.sum(stats, axis=1)


# ----------------------------------------------------------------------------
# Kernel 3: final InstanceNorm(affine) + LeakyReLU, fully lane-dense.
# ----------------------------------------------------------------------------
def _norm_act_kernel(y_ref, sc_ref, sh_ref, o_ref):
    z = y_ref[0] * sc_ref[0] + sh_ref[0]
    o_ref[0] = jnp.where(z >= 0, z, NEG_SLOPE * z)


def norm_act(y, scale_t, shift_t, row_tile=None):
    """y: (N,H,W*C); scale_t/shift_t: (N,1,W*C) channel scales tiled along W."""
    n, h, wc = y.shape
    budget, limit = _vmem_caps()
    per_row = 4 * 2 * wc * _F32
    th = _pick_rows(h, per_row, budget, row_tile)
    return pl.pallas_call(
        _norm_act_kernel,
        out_shape=jax.ShapeDtypeStruct((n, h, wc), jnp.float32),
        grid=(n, h // th),
        in_specs=[pl.BlockSpec((1, th, wc), lambda i, t: (i, t, 0)),
                  pl.BlockSpec((1, 1, wc), lambda i, t: (i, 0, 0)),
                  pl.BlockSpec((1, 1, wc), lambda i, t: (i, 0, 0))],
        out_specs=pl.BlockSpec((1, th, wc), lambda i, t: (i, t, 0)),
        compiler_params=pltpu.CompilerParams(
            dimension_semantics=("parallel", "parallel"),
            vmem_limit_bytes=limit),
    )(y, scale_t, shift_t)


def _in_scale_shift(stats, gamma, beta, hw):
    """Tiny per-(image, channel) InstanceNorm finalisation (wrapper glue)."""
    inv = 1.0 / float(hw)
    mean = stats[:, 0, :] * inv
    var = jnp.maximum(stats[:, 1, :] * inv - mean * mean, 0.0)
    scale = gamma * lax.rsqrt(var + EPS)                 # (N, C)
    shift = beta - mean * scale
    return scale, shift


# ----------------------------------------------------------------------------
# UpCat forward (wrapper)
# ----------------------------------------------------------------------------
def upcat_forward(params, x_nchw, x_e_nchw, row_tile=None):
    x = jnp.transpose(x_nchw, (0, 2, 3, 1))              # NCHW -> NHWC
    x0 = deconv2x2_s2(x, params["up_w"], params["up_b"], row_tile=row_tile)
    cout = params["c0_w"].shape[-1]

    if x_e_nchw is not None:
        xe = jnp.transpose(x_e_nchw, (0, 2, 3, 1))
        pad = [(0, 0)] * 4
        need = False
        for ax in (1, 2):                                # H, W in NHWC
            if xe.shape[ax] != x0.shape[ax]:
                pad[ax] = (0, xe.shape[ax] - x0.shape[ax])
                need = True
        if need:                                         # is_pad=True replicate pad
            x0 = jnp.pad(x0, pad, mode="edge")
        ce = xe.shape[-1]
        w0 = params["c0_w"]
        w0s = [w0[:, :, :ce, :].reshape(9, ce, cout),
               w0[:, :, ce:, :].reshape(9, -1, cout)]
        xs = [xe, x0]                                    # concat fused in-kernel
    else:
        w0s = [params["c0_w"].reshape(9, -1, cout)]
        xs = [x0]

    n, h, w, _ = xs[0].shape
    # conv_0 (un-normalised) + stats
    y0, st0 = conv3x3_stats(xs, w0s, params["c0_b"], row_tile=row_tile)
    sc0, sh0 = _in_scale_shift(st0, params["c0_g"], params["c0_beta"], h * w)

    # conv_1 with conv_0's InstanceNorm + LeakyReLU fused into its halo fetch
    y0_4d = y0.reshape(n, h, w, cout)                    # free view for the DMA
    y1, st1 = conv3x3_stats([y0_4d], [params["c1_w"].reshape(9, cout, cout)],
                            params["c1_b"],
                            prenorm=(sc0[:, None, :], sh0[:, None, :]),
                            row_tile=row_tile)
    sc1, sh1 = _in_scale_shift(st1, params["c1_g"], params["c1_beta"], h * w)

    # final InstanceNorm + LeakyReLU (lane-dense elementwise pass)
    out = norm_act(y1, jnp.tile(sc1, (1, w))[:, None, :],
                   jnp.tile(sh1, (1, w))[:, None, :], row_tile=row_tile)
    out = out.reshape(n, h, w, cout)
    return jnp.transpose(out, (0, 3, 1, 2))              # back to NCHW


# ----------------------------------------------------------------------------
# Deterministic parameter init (shapes implied by UpCat.__init__, deconv/halves)
# ----------------------------------------------------------------------------
def init_params(key, in_chns, cat_chns, out_chns):
    up_chns = in_chns // 2
    cin0 = cat_chns + up_chns
    ks = jax.random.split(key, 10)
    f = lambda k, shape, s: s * jax.random.normal(k, shape, jnp.float32)
    return dict(
        up_w=f(ks[0], (2, 2, in_chns, up_chns), 0.2),    # ConvTranspose2d (dh,dw,c,d)
        up_b=f(ks[1], (1, up_chns), 0.1),
        c0_w=f(ks[2], (3, 3, cin0, out_chns), 0.1),      # HWIO, I = [xe, x0]
        c0_b=f(ks[3], (1, out_chns), 0.1),
        c0_g=1.0 + f(ks[4], (1, out_chns), 0.1),
        c0_beta=f(ks[5], (1, out_chns), 0.1),
        c1_w=f(ks[6], (3, 3, out_chns, out_chns), 0.1),
        c1_b=f(ks[7], (1, out_chns), 0.1),
        c1_g=1.0 + f(ks[8], (1, out_chns), 0.1),
        c1_beta=f(ks[9], (1, out_chns), 0.1),
    )


# ----------------------------------------------------------------------------
# Pure-JAX reference (same math, no Pallas) for a correctness cross-check
# ----------------------------------------------------------------------------
def _ref_block(x, w, b, g, beta):
    y = lax.conv_general_dilated(x, w, window_strides=(1, 1),
                                 padding=((1, 1), (1, 1)),
                                 dimension_numbers=("NHWC", "HWIO", "NHWC"))
    y = y + b.reshape(1, 1, 1, -1)
    mean = jnp.mean(y, axis=(1, 2), keepdims=True)
    var = jnp.mean((y - mean) ** 2, axis=(1, 2), keepdims=True)
    y = (y - mean) * lax.rsqrt(var + EPS)
    y = y * g.reshape(1, 1, 1, -1) + beta.reshape(1, 1, 1, -1)
    return jnp.where(y >= 0, y, NEG_SLOPE * y)


def upcat_reference(params, x_nchw, x_e_nchw):
    x = jnp.transpose(x_nchw, (0, 2, 3, 1))
    n, h, w, _ = x.shape
    t = jnp.einsum("nhwc,uvcd->nhuwvd", x, params["up_w"])
    x0 = t.reshape(n, 2 * h, 2 * w, -1) + params["up_b"].reshape(1, 1, 1, -1)
    xe = jnp.transpose(x_e_nchw, (0, 2, 3, 1))
    xcat = jnp.concatenate([xe, x0], axis=-1)
    y = _ref_block(xcat, params["c0_w"], params["c0_b"],
                   params["c0_g"], params["c0_beta"])
    y = _ref_block(y, params["c1_w"], params["c1_b"],
                   params["c1_g"], params["c1_beta"])
    return jnp.transpose(y, (0, 3, 1, 2))


if __name__ == "__main__":
    key = jax.random.PRNGKey(0)
    k_p, k_x, k_e = jax.random.split(key, 3)

    # decoder features (N, in_chns, 16, 16), encoder skip (N, cat_chns, 32, 32)
    N, in_chns, cat_chns, out_chns = 2, 8, 4, 8
    H = W = 16

    params = init_params(k_p, in_chns, cat_chns, out_chns)
    x = jax.random.normal(k_x, (N, in_chns, H, W), jnp.float32)
    x_e = jax.random.normal(k_e, (N, cat_chns, 2 * H, 2 * W), jnp.float32)

    ref = jax.block_until_ready(upcat_reference(params, x, x_e))

    # default (large-tile) path
    out = jax.block_until_ready(upcat_forward(params, x, x_e))
    assert out.shape == (N, out_chns, 2 * H, 2 * W), out.shape
    err = float(jnp.max(jnp.abs(out - ref)))
    assert err < 1e-3, f"default-tile max abs err {err}"

    # small forced tile: exercises multi-tile grids, the double-buffered halo
    # prefetch and the in-kernel zero-pad boundary masking.
    out_t = jax.block_until_ready(upcat_forward(params, x, x_e, row_tile=8))
    err_t = float(jnp.max(jnp.abs(out_t - ref)))
    assert err_t < 1e-3, f"tiled max abs err {err_t}"

    print("KERNEL_OK")
</pallas_src>

<mosaic_0001>
module attributes {stable_mosaic.version = 11 : i64} {
  func.func @kernel(%arg0: i32, %arg1: i32, %arg2: memref<1x16x16x8xf32, #tpu.memory_space<vmem>>, %arg3: memref<8x16xf32, #tpu.memory_space<vmem>>, %arg4: memref<1x16xf32, #tpu.memory_space<vmem>>, %arg5: memref<1x16x2x128xf32, #tpu.memory_space<vmem>>) attributes {dimension_semantics = [#tpu.dimension_semantics<parallel>, #tpu.dimension_semantics<parallel>], iteration_bounds = array<i64: 2, 1>, scalar_prefetch = 0 : i64, scratch_operands = 0 : i64, tpu.core_type = #tpu.core_type<tc>, window_params = [{transform_indices = @transform_0, window_bounds = array<i64: 1, 16, 16, 8>}, {pipeline_mode = #tpu.pipeline_mode<synchronous>, transform_indices = @transform_1, window_bounds = array<i64: 8, 16>}, {pipeline_mode = #tpu.pipeline_mode<synchronous>, transform_indices = @transform_2, window_bounds = array<i64: 1, 16>}, {transform_indices = @transform_3, window_bounds = array<i64: 1, 16, 2, 128>}]} {
    %c0 = arith.constant 0 : index
    %c0_0 = arith.constant 0 : index
    %c0_1 = arith.constant 0 : index
    %c0_2 = arith.constant 0 : index
    %0 = vector.load %arg2[%c0, %c0_0, %c0_1, %c0_2] : memref<1x16x16x8xf32, #tpu.memory_space<vmem>>, vector<1x16x16x8xf32>
    %1 = vector.shape_cast %0 : vector<1x16x16x8xf32> to vector<16x16x8xf32>
    %2 = vector.shape_cast %1 : vector<16x16x8xf32> to vector<256x8xf32>
    %c0_3 = arith.constant 0 : index
    %c0_4 = arith.constant 0 : index
    %3 = vector.load %arg3[%c0_3, %c0_4] : memref<8x16xf32, #tpu.memory_space<vmem>>, vector<8x16xf32>
    %cst = arith.constant dense<0.000000e+00> : vector<256x16xf32>
    %4 = tpu.matmul %2, %3, %cst {dimension_numbers = #tpu.dot_dimension_numbers<[1], [0], [0], [1], [0, 0, 1, 1], [], []>} : vector<256x8xf32>, vector<8x16xf32>, vector<256x16xf32> -> vector<256x16xf32>
    %c0_5 = arith.constant 0 : index
    %c0_6 = arith.constant 0 : index
    %5 = vector.load %arg4[%c0_5, %c0_6] : memref<1x16xf32, #tpu.memory_space<vmem>>, vector<1x16xf32>
    %6 = vector.broadcast %5 : vector<1x16xf32> to vector<256x16xf32>
    %7 = arith.addf %4, %6 : vector<256x16xf32>
    %8 = vector.shape_cast %7 : vector<256x16xf32> to vector<16x16x16xf32>
    %9 = vector.extract_strided_slice %8 {offsets = [0, 0, 0], sizes = [16, 16, 8], strides = [1, 1, 1]} : vector<16x16x16xf32> to vector<16x16x8xf32>
    %10 = vector.extract_strided_slice %9 {offsets = [0, 0, 0], sizes = [16, 1, 8], strides = [1, 1, 1]} : vector<16x16x8xf32> to vector<16x1x8xf32>
    %11 = vector.shape_cast %10 : vector<16x1x8xf32> to vector<16x8xf32>
    %c0_7 = arith.constant 0 : index
    %c0_8 = arith.constant 0 : index
    %c0_9 = arith.constant 0 : index
    %c0_10 = arith.constant 0 : index
    %12 = vector.load %arg5[%c0_7, %c0_8, %c0_9, %c0_10] : memref<1x16x2x128xf32, #tpu.memory_space<vmem>>, vector<1x16x1x8xf32>
    %13 = vector.shape_cast %12 : vector<1x16x1x8xf32> to vector<16x8xf32>
    %14 = vector.shape_cast %11 : vector<16x8xf32> to vector<1x16x1x8xf32>
    tpu.vector_store %arg5[%c0_7, %c0_8, %c0_9, %c0_10], %14 {strides = array<i32>} : memref<1x16x2x128xf32, #tpu.memory_space<vmem>>, vector<1x16x1x8xf32>,
    %15 = vector.extract_strided_slice %9 {offsets = [0, 1, 0], sizes = [16, 1, 8], strides = [1, 1, 1]} : vector<16x16x8xf32> to vector<16x1x8xf32>
    %16 = vector.shape_cast %15 : vector<16x1x8xf32> to vector<16x8xf32>
    %c0_11 = arith.constant 0 : index
    %c0_12 = arith.constant 0 : index
    %c0_13 = arith.constant 0 : index
    %c8 = arith.constant 8 : index
    %17 = vector.load %arg5[%c0_11, %c0_12, %c0_13, %c8] : memref<1x16x2x128xf32, #tpu.memory_space<vmem>>, vector<1x16x1x8xf32>
    %18 = vector.shape_cast %17 : vector<1x16x1x8xf32> to vector<16x8xf32>
    %19 = vector.shape_cast %16 : vector<16x8xf32> to vector<1x16x1x8xf32>
    tpu.vector_store %arg5[%c0_11, %c0_12, %c0_13, %c8], %19 {strides = array<i32>} : memref<1x16x2x128xf32, #tpu.memory_space<vmem>>, vector<1x16x1x8xf32>,
    %20 = vector.extract_strided_slice %9 {offsets = [0, 2, 0], sizes = [16, 1, 8], strides = [1, 1, 1]} : vector<16x16x8xf32> to vector<16x1x8xf32>
    %21 = vector.shape_cast %20 : vector<16x1x8xf32> to vector<16x8xf32>
    %c0_14 = arith.constant 0 : index
    %c0_15 = arith.constant 0 : index
    %c0_16 = arith.constant 0 : index
    %c16 = arith.constant 16 : index
    %22 = vector.load %arg5[%c0_14, %c0_15, %c0_16, %c16] : memref<1x16x2x128xf32, #tpu.memory_space<vmem>>, vector<1x16x1x8xf32>
    %23 = vector.shape_cast %22 : vector<1x16x1x8xf32> to vector<16x8xf32>
    %24 = vector.shape_cast %21 : vector<16x8xf32> to vector<1x16x1x8xf32>
    tpu.vector_store %arg5[%c0_14, %c0_15, %c0_16, %c16], %24 {strides = array<i32>} : memref<1x16x2x128xf32, #tpu.memory_space<vmem>>, vector<1x16x1x8xf32>,
    %25 = vector.extract_strided_slice %9 {offsets = [0, 3, 0], sizes = [16, 1, 8], strides = [1, 1, 1]} : vector<16x16x8xf32> to vector<16x1x8xf32>
    %26 = vector.shape_cast %25 : vector<16x1x8xf32> to vector<16x8xf32>
    %c0_17 = arith.constant 0 : index
    %c0_18 = arith.constant 0 : index
    %c0_19 = arith.constant 0 : index
    %c24 = arith.constant 24 : index
    %27 = vector.load %arg5[%c0_17, %c0_18, %c0_19, %c24] : memref<1x16x2x128xf32, #tpu.memory_space<vmem>>, vector<1x16x1x8xf32>
    %28 = vector.shape_cast %27 : vector<1x16x1x8xf32> to vector<16x8xf32>
    %29 = vector.shape_cast %26 : vector<16x8xf32> to vector<1x16x1x8xf32>
    tpu.vector_store %arg5[%c0_17, %c0_18, %c0_19, %c24], %29 {strides = array<i32>} : memref<1x16x2x128xf32, #tpu.memory_space<vmem>>, vector<1x16x1x8xf32>,
    %30 = vector.extract_strided_slice %9 {offsets = [0, 4, 0], sizes = [16, 1, 8], strides = [1, 1, 1]} : vector<16x16x8xf32> to vector<16x1x8xf32>
    %31 = vector.shape_cast %30 : vector<16x1x8xf32> to vector<16x8xf32>
    %c0_20 = arith.constant 0 : index
    %c0_21 = arith.constant 0 : index
    %c0_22 = arith.constant 0 : index
    %c32 = arith.constant 32 : index
    %32 = vector.load %arg5[%c0_20, %c0_21, %c0_22, %c32] : memref<1x16x2x128xf32, #tpu.memory_space<vmem>>, vector<1x16x1x8xf32>
    %33 = vector.shape_cast %32 : vector<1x16x1x8xf32> to vector<16x8xf32>
    %34 = vector.shape_cast %31 : vector<16x8xf32> to vector<1x16x1x8xf32>
    tpu.vector_store %arg5[%c0_20, %c0_21, %c0_22, %c32], %34 {strides = array<i32>} : memref<1x16x2x128xf32, #tpu.memory_space<vmem>>, vector<1x16x1x8xf32>,
    %35 = vector.extract_strided_slice %9 {offsets = [0, 5, 0], sizes = [16, 1, 8], strides = [1, 1, 1]} : vector<16x16x8xf32> to vector<16x1x8xf32>
    %36 = vector.shape_cast %35 : vector<16x1x8xf32> to vector<16x8xf32>
    %c0_23 = arith.constant 0 : index
    %c0_24 = arith.constant 0 : index
    %c0_25 = arith.constant 0 : index
    %c40 = arith.constant 40 : index
    %37 = vector.load %arg5[%c0_23, %c0_24, %c0_25, %c40] : memref<1x16x2x128xf32, #tpu.memory_space<vmem>>, vector<1x16x1x8xf32>
    %38 = vector.shape_cast %37 : vector<1x16x1x8xf32> to vector<16x8xf32>
    %39 = vector.shape_cast %36 : vector<16x8xf32> to vector<1x16x1x8xf32>
    tpu.vector_store %arg5[%c0_23, %c0_24, %c0_25, %c40], %39 {strides = array<i32>} : memref<1x16x2x128xf32, #tpu.memory_space<vmem>>, vector<1x16x1x8xf32>,
    %40 = vector.extract_strided_slice %9 {offsets = [0, 6, 0], sizes = [16, 1, 8], strides = [1, 1, 1]} : vector<16x16x8xf32> to vector<16x1x8xf32>
    %41 = vector.shape_cast %40 : vector<16x1x8xf32> to vector<16x8xf32>
    %c0_26 = arith.constant 0 : index
    %c0_27 = arith.constant 0 : index
    %c0_28 = arith.constant 0 : index
    %c48 = arith.constant 48 : index
    %42 = vector.load %arg5[%c0_26, %c0_27, %c0_28, %c48] : memref<1x16x2x128xf32, #tpu.memory_space<vmem>>, vector<1x16x1x8xf32>
    %43 = vector.shape_cast %42 : vector<1x16x1x8xf32> to vector<16x8xf32>
    %44 = vector.shape_cast %41 : vector<16x8xf32> to vector<1x16x1x8xf32>
    tpu.vector_store %arg5[%c0_26, %c0_27, %c0_28, %c48], %44 {strides = array<i32>} : memref<1x16x2x128xf32, #tpu.memory_space<vmem>>, vector<1x16x1x8xf32>,
    %45 = vector.extract_strided_slice %9 {offsets = [0, 7, 0], sizes = [16, 1, 8], strides = [1, 1, 1]} : vector<16x16x8xf32> to vector<16x1x8xf32>
    %46 = vector.shape_cast %45 : vector<16x1x8xf32> to vector<16x8xf32>
    %c0_29 = arith.constant 0 : index
    %c0_30 = arith.constant 0 : index
    %c0_31 = arith.constant 0 : index
    %c56 = arith.constant 56 : index
    %47 = vector.load %arg5[%c0_29, %c0_30, %c0_31, %c56] : memref<1x16x2x128xf32, #tpu.memory_space<vmem>>, vector<1x16x1x8xf32>
    %48 = vector.shape_cast %47 : vector<1x16x1x8xf32> to vector<16x8xf32>
    %49 = vector.shape_cast %46 : vector<16x8xf32> to vector<1x16x1x8xf32>
    tpu.vector_store %arg5[%c0_29, %c0_30, %c0_31, %c56], %49 {strides = array<i32>} : memref<1x16x2x128xf32, #tpu.memory_space<vmem>>, vector<1x16x1x8xf32>,
    %50 = vector.extract_strided_slice %9 {offsets = [0, 8, 0], sizes = [16, 1, 8], strides = [1, 1, 1]} : vector<16x16x8xf32> to vector<16x1x8xf32>
    %51 = vector.shape_cast %50 : vector<16x1x8xf32> to vector<16x8xf32>
    %c0_32 = arith.constant 0 : index
    %c0_33 = arith.constant 0 : index
    %c0_34 = arith.constant 0 : index
    %c64 = arith.constant 64 : index
    %52 = vector.load %arg5[%c0_32, %c0_33, %c0_34, %c64] : memref<1x16x2x128xf32, #tpu.memory_space<vmem>>, vector<1x16x1x8xf32>
    %53 = vector.shape_cast %52 : vector<1x16x1x8xf32> to vector<16x8xf32>
    %54 = vector.shape_cast %51 : vector<16x8xf32> to vector<1x16x1x8xf32>
    tpu.vector_store %arg5[%c0_32, %c0_33, %c0_34, %c64], %54 {strides = array<i32>} : memref<1x16x2x128xf32, #tpu.memory_space<vmem>>, vector<1x16x1x8xf32>,
    %55 = vector.extract_strided_slice %9 {offsets = [0, 9, 0], sizes = [16, 1, 8], strides = [1, 1, 1]} : vector<16x16x8xf32> to vector<16x1x8xf32>
    %56 = vector.shape_cast %55 : vector<16x1x8xf32> to vector<16x8xf32>
    %c0_35 = arith.constant 0 : index
    %c0_36 = arith.constant 0 : index
    %c0_37 = arith.constant 0 : index
    %c72 = arith.constant 72 : index
    %57 = vector.load %arg5[%c0_35, %c0_36, %c0_37, %c72] : memref<1x16x2x128xf32, #tpu.memory_space<vmem>>, vector<1x16x1x8xf32>
    %58 = vector.shape_cast %57 : vector<1x16x1x8xf32> to vector<16x8xf32>
    %59 = vector.shape_cast %56 : vector<16x8xf32> to vector<1x16x1x8xf32>
    tpu.vector_store %arg5[%c0_35, %c0_36, %c0_37, %c72], %59 {strides = array<i32>} : memref<1x16x2x128xf32, #tpu.memory_space<vmem>>, vector<1x16x1x8xf32>,
    %60 = vector.extract_strided_slice %9 {offsets = [0, 10, 0], sizes = [16, 1, 8], strides = [1, 1, 1]} : vector<16x16x8xf32> to vector<16x1x8xf32>
    %61 = vector.shape_cast %60 : vector<16x1x8xf32> to vector<16x8xf32>
    %c0_38 = arith.constant 0 : index
    %c0_39 = arith.constant 0 : index
    %c0_40 = arith.constant 0 : index
    %c80 = arith.constant 80 : index
    %62 = vector.load %arg5[%c0_38, %c0_39, %c0_40, %c80] : memref<1x16x2x128xf32, #tpu.memory_space<vmem>>, vector<1x16x1x8xf32>
    %63 = vector.shape_cast %62 : vector<1x16x1x8xf32> to vector<16x8xf32>
    %64 = vector.shape_cast %61 : vector<16x8xf32> to vector<1x16x1x8xf32>
    tpu.vector_store %arg5[%c0_38, %c0_39, %c0_40, %c80], %64 {strides = array<i32>} : memref<1x16x2x128xf32, #tpu.memory_space<vmem>>, vector<1x16x1x8xf32>,
    %65 = vector.extract_strided_slice %9 {offsets = [0, 11, 0], sizes = [16, 1, 8], strides = [1, 1, 1]} : vector<16x16x8xf32> to vector<16x1x8xf32>
    %66 = vector.shape_cast %65 : vector<16x1x8xf32> to vector<16x8xf32>
    %c0_41 = arith.constant 0 : index
    %c0_42 = arith.constant 0 : index
    %c0_43 = arith.constant 0 : index
    %c88 = arith.constant 88 : index
    %67 = vector.load %arg5[%c0_41, %c0_42, %c0_43, %c88] : memref<1x16x2x128xf32, #tpu.memory_space<vmem>>, vector<1x16x1x8xf32>
    %68 = vector.shape_cast %67 : vector<1x16x1x8xf32> to vector<16x8xf32>
    %69 = vector.shape_cast %66 : vector<16x8xf32> to vector<1x16x1x8xf32>
    tpu.vector_store %arg5[%c0_41, %c0_42, %c0_43, %c88], %69 {strides = array<i32>} : memref<1x16x2x128xf32, #tpu.memory_space<vmem>>, vector<1x16x1x8xf32>,
    %70 = vector.extract_strided_slice %9 {offsets = [0, 12, 0], sizes = [16, 1, 8], strides = [1, 1, 1]} : vector<16x16x8xf32> to vector<16x1x8xf32>
    %71 = vector.shape_cast %70 : vector<16x1x8xf32> to vector<16x8xf32>
    %c0_44 = arith.constant 0 : index
    %c0_45 = arith.constant 0 : index
    %c0_46 = arith.constant 0 : index
    %c96 = arith.constant 96 : index
    %72 = vector.load %arg5[%c0_44, %c0_45, %c0_46, %c96] : memref<1x16x2x128xf32, #tpu.memory_space<vmem>>, vector<1x16x1x8xf32>
    %73 = vector.shape_cast %72 : vector<1x16x1x8xf32> to vector<16x8xf32>
    %74 = vector.shape_cast %71 : vector<16x8xf32> to vector<1x16x1x8xf32>
    tpu.vector_store %arg5[%c0_44, %c0_45, %c0_46, %c96], %74 {strides = array<i32>} : memref<1x16x2x128xf32, #tpu.memory_space<vmem>>, vector<1x16x1x8xf32>,
    %75 = vector.extract_strided_slice %9 {offsets = [0, 13, 0], sizes = [16, 1, 8], strides = [1, 1, 1]} : vector<16x16x8xf32> to vector<16x1x8xf32>
    %76 = vector.shape_cast %75 : vector<16x1x8xf32> to vector<16x8xf32>
    %c0_47 = arith.constant 0 : index
    %c0_48 = arith.constant 0 : index
    %c0_49 = arith.constant 0 : index
    %c104 = arith.constant 104 : index
    %77 = vector.load %arg5[%c0_47, %c0_48, %c0_49, %c104] : memref<1x16x2x128xf32, #tpu.memory_space<vmem>>, vector<1x16x1x8xf32>
    %78 = vector.shape_cast %77 : vector<1x16x1x8xf32> to vector<16x8xf32>
    %79 = vector.shape_cast %76 : vector<16x8xf32> to vector<1x16x1x8xf32>
    tpu.vector_store %arg5[%c0_47, %c0_48, %c0_49, %c104], %79 {strides = array<i32>} : memref<1x16x2x128xf32, #tpu.memory_space<vmem>>, vector<1x16x1x8xf32>,
    %80 = vector.extract_strided_slice %9 {offsets = [0, 14, 0], sizes = [16, 1, 8], strides = [1, 1, 1]} : vector<16x16x8xf32> to vector<16x1x8xf32>
    %81 = vector.shape_cast %80 : vector<16x1x8xf32> to vector<16x8xf32>
    %c0_50 = arith.constant 0 : index
    %c0_51 = arith.constant 0 : index
    %c0_52 = arith.constant 0 : index
    %c112 = arith.constant 112 : index
    %82 = vector.load %arg5[%c0_50, %c0_51, %c0_52, %c112] : memref<1x16x2x128xf32, #tpu.memory_space<vmem>>, vector<1x16x1x8xf32>
    %83 = vector.shape_cast %82 : vector<1x16x1x8xf32> to vector<16x8xf32>
    %84 = vector.shape_cast %81 : vector<16x8xf32> to vector<1x16x1x8xf32>
    tpu.vector_store %arg5[%c0_50, %c0_51, %c0_52, %c112], %84 {strides = array<i32>} : memref<1x16x2x128xf32, #tpu.memory_space<vmem>>, vector<1x16x1x8xf32>,
    %85 = vector.extract_strided_slice %9 {offsets = [0, 15, 0], sizes = [16, 1, 8], strides = [1, 1, 1]} : vector<16x16x8xf32> to vector<16x1x8xf32>
    %86 = vector.shape_cast %85 : vector<16x1x8xf32> to vector<16x8xf32>
    %c0_53 = arith.constant 0 : index
    %c0_54 = arith.constant 0 : index
    %c0_55 = arith.constant 0 : index
    %c120 = arith.constant 120 : index
    %87 = vector.load %arg5[%c0_53, %c0_54, %c0_55, %c120] : memref<1x16x2x128xf32, #tpu.memory_space<vmem>>, vector<1x16x1x8xf32>
    %88 = vector.shape_cast %87 : vector<1x16x1x8xf32> to vector<16x8xf32>
    %89 = vector.shape_cast %86 : vector<16x8xf32> to vector<1x16x1x8xf32>
    tpu.vector_store %arg5[%c0_53, %c0_54, %c0_55, %c120], %89 {strides = array<i32>} : memref<1x16x2x128xf32, #tpu.memory_space<vmem>>, vector<1x16x1x8xf32>,
    %90 = vector.extract_strided_slice %8 {offsets = [0, 0, 8], sizes = [16, 16, 8], strides = [1, 1, 1]} : vector<16x16x16xf32> to vector<16x16x8xf32>
    %91 = vector.extract_strided_slice %90 {offsets = [0, 0, 0], sizes = [16, 1, 8], strides = [1, 1, 1]} : vector<16x16x8xf32> to vector<16x1x8xf32>
    %92 = vector.shape_cast %91 : vector<16x1x8xf32> to vector<16x8xf32>
    %c0_56 = arith.constant 0 : index
    %c0_57 = arith.constant 0 : index
    %c1 = arith.constant 1 : index
    %c0_58 = arith.constant 0 : index
    %93 = vector.load %arg5[%c0_56, %c0_57, %c1, %c0_58] : memref<1x16x2x128xf32, #tpu.memory_space<vmem>>, vector<1x16x1x8xf32>
    %94 = vector.shape_cast %93 : vector<1x16x1x8xf32> to vector<16x8xf32>
    %95 = vector.shape_cast %92 : vector<16x8xf32> to vector<1x16x1x8xf32>
    tpu.vector_store %arg5[%c0_56, %c0_57, %c1, %c0_58], %95 {strides = array<i32>} : memref<1x16x2x128xf32, #tpu.memory_space<vmem>>, vector<1x16x1x8xf32>,
    %96 = vector.extract_strided_slice %90 {offsets = [0, 1, 0], sizes = [16, 1, 8], strides = [1, 1, 1]} : vector<16x16x8xf32> to vector<16x1x8xf32>
    %97 = vector.shape_cast %96 : vector<16x1x8xf32> to vector<16x8xf32>
    %c0_59 = arith.constant 0 : index
    %c0_60 = arith.constant 0 : index
    %c1_61 = arith.constant 1 : index
    %c8_62 = arith.constant 8 : index
    %98 = vector.load %arg5[%c0_59, %c0_60, %c1_61, %c8_62] : memref<1x16x2x128xf32, #tpu.memory_space<vmem>>, vector<1x16x1x8xf32>
    %99 = vector.shape_cast %98 : vector<1x16x1x8xf32> to vector<16x8xf32>
    %100 = vector.shape_cast %97 : vector<16x8xf32> to vector<1x16x1x8xf32>
    tpu.vector_store %arg5[%c0_59, %c0_60, %c1_61, %c8_62], %100 {strides = array<i32>} : memref<1x16x2x128xf32, #tpu.memory_space<vmem>>, vector<1x16x1x8xf32>,
    %101 = vector.extract_strided_slice %90 {offsets = [0, 2, 0], sizes = [16, 1, 8], strides = [1, 1, 1]} : vector<16x16x8xf32> to vector<16x1x8xf32>
    %102 = vector.shape_cast %101 : vector<16x1x8xf32> to vector<16x8xf32>
    %c0_63 = arith.constant 0 : index
    %c0_64 = arith.constant 0 : index
    %c1_65 = arith.constant 1 : index
    %c16_66 = arith.constant 16 : index
    %103 = vector.load %arg5[%c0_63, %c0_64, %c1_65, %c16_66] : memref<1x16x2x128xf32, #tpu.memory_space<vmem>>, vector<1x16x1x8xf32>
    %104 = vector.shape_cast %103 : vector<1x16x1x8xf32> to vector<16x8xf32>
    %105 = vector.shape_cast %102 : vector<16x8xf32> to vector<1x16x1x8xf32>
    tpu.vector_store %arg5[%c0_63, %c0_64, %c1_65, %c16_66], %105 {strides = array<i32>} : memref<1x16x2x128xf32, #tpu.memory_space<vmem>>, vector<1x16x1x8xf32>,
    %106 = vector.extract_strided_slice %90 {offsets = [0, 3, 0], sizes = [16, 1, 8], strides = [1, 1, 1]} : vector<16x16x8xf32> to vector<16x1x8xf32>
    %107 = vector.shape_cast %106 : vector<16x1x8xf32> to vector<16x8xf32>
    %c0_67 = arith.constant 0 : index
    %c0_68 = arith.constant 0 : index
    %c1_69 = arith.constant 1 : index
    %c24_70 = arith.constant 24 : index
    %108 = vector.load %arg5[%c0_67, %c0_68, %c1_69, %c24_70] : memref<1x16x2x128xf32, #tpu.memory_space<vmem>>, vector<1x16x1x8xf32>
    %109 = vector.shape_cast %108 : vector<1x16x1x8xf32> to vector<16x8xf32>
    %110 = vector.shape_cast %107 : vector<16x8xf32> to vector<1x16x1x8xf32>
    tpu.vector_store %arg5[%c0_67, %c0_68, %c1_69, %c24_70], %110 {strides = array<i32>} : memref<1x16x2x128xf32, #tpu.memory_space<vmem>>, vector<1x16x1x8xf32>,
    %111 = vector.extract_strided_slice %90 {offsets = [0, 4, 0], sizes = [16, 1, 8], strides = [1, 1, 1]} : vector<16x16x8xf32> to vector<16x1x8xf32>
    %112 = vector.shape_cast %111 : vector<16x1x8xf32> to vector<16x8xf32>
    %c0_71 = arith.constant 0 : index
    %c0_72 = arith.constant 0 : index
    %c1_73 = arith.constant 1 : index
    %c32_74 = arith.constant 32 : index
    %113 = vector.load %arg5[%c0_71, %c0_72, %c1_73, %c32_74] : memref<1x16x2x128xf32, #tpu.memory_space<vmem>>, vector<1x16x1x8xf32>
    %114 = vector.shape_cast %113 : vector<1x16x1x8xf32> to vector<16x8xf32>
    %115 = vector.shape_cast %112 : vector<16x8xf32> to vector<1x16x1x8xf32>
    tpu.vector_store %arg5[%c0_71, %c0_72, %c1_73, %c32_74], %115 {strides = array<i32>} : memref<1x16x2x128xf32, #tpu.memory_space<vmem>>, vector<1x16x1x8xf32>,
    %116 = vector.extract_strided_slice %90 {offsets = [0, 5, 0], sizes = [16, 1, 8], strides = [1, 1, 1]} : vector<16x16x8xf32> to vector<16x1x8xf32>
    %117 = vector.shape_cast %116 : vector<16x1x8xf32> to vector<16x8xf32>
    %c0_75 = arith.constant 0 : index
    %c0_76 = arith.constant 0 : index
    %c1_77 = arith.constant 1 : index
    %c40_78 = arith.constant 40 : index
    %118 = vector.load %arg5[%c0_75, %c0_76, %c1_77, %c40_78] : memref<1x16x2x128xf32, #tpu.memory_space<vmem>>, vector<1x16x1x8xf32>
    %119 = vector.shape_cast %118 : vector<1x16x1x8xf32> to vector<16x8xf32>
    %120 = vector.shape_cast %117 : vector<16x8xf32> to vector<1x16x1x8xf32>
    tpu.vector_store %arg5[%c0_75, %c0_76, %c1_77, %c40_78], %120 {strides = array<i32>} : memref<1x16x2x128xf32, #tpu.memory_space<vmem>>, vector<1x16x1x8xf32>,
    %121 = vector.extract_strided_slice %90 {offsets = [0, 6, 0], sizes = [16, 1, 8], strides = [1, 1, 1]} : vector<16x16x8xf32> to vector<16x1x8xf32>
    %122 = vector.shape_cast %121 : vector<16x1x8xf32> to vector<16x8xf32>
    %c0_79 = arith.constant 0 : index
    %c0_80 = arith.constant 0 : index
    %c1_81 = arith.constant 1 : index
    %c48_82 = arith.constant 48 : index
    %123 = vector.load %arg5[%c0_79, %c0_80, %c1_81, %c48_82] : memref<1x16x2x128xf32, #tpu.memory_space<vmem>>, vector<1x16x1x8xf32>
    %124 = vector.shape_cast %123 : vector<1x16x1x8xf32> to vector<16x8xf32>
    %125 = vector.shape_cast %122 : vector<16x8xf32> to vector<1x16x1x8xf32>
    tpu.vector_store %arg5[%c0_79, %c0_80, %c1_81, %c48_82], %125 {strides = array<i32>} : memref<1x16x2x128xf32, #tpu.memory_space<vmem>>, vector<1x16x1x8xf32>,
    %126 = vector.extract_strided_slice %90 {offsets = [0, 7, 0], sizes = [16, 1, 8], strides = [1, 1, 1]} : vector<16x16x8xf32> to vector<16x1x8xf32>
    %127 = vector.shape_cast %126 : vector<16x1x8xf32> to vector<16x8xf32>
    %c0_83 = arith.constant 0 : index
    %c0_84 = arith.constant 0 : index
    %c1_85 = arith.constant 1 : index
    %c56_86 = arith.constant 56 : index
    %128 = vector.load %arg5[%c0_83, %c0_84, %c1_85, %c56_86] : memref<1x16x2x128xf32, #tpu.memory_space<vmem>>, vector<1x16x1x8xf32>
    %129 = vector.shape_cast %128 : vector<1x16x1x8xf32> to vector<16x8xf32>
    %130 = vector.shape_cast %127 : vector<16x8xf32> to vector<1x16x1x8xf32>
    tpu.vector_store %arg5[%c0_83, %c0_84, %c1_85, %c56_86], %130 {strides = array<i32>} : memref<1x16x2x128xf32, #tpu.memory_space<vmem>>, vector<1x16x1x8xf32>,
    %131 = vector.extract_strided_slice %90 {offsets = [0, 8, 0], sizes = [16, 1, 8], strides = [1, 1, 1]} : vector<16x16x8xf32> to vector<16x1x8xf32>
    %132 = vector.shape_cast %131 : vector<16x1x8xf32> to vector<16x8xf32>
    %c0_87 = arith.constant 0 : index
    %c0_88 = arith.constant 0 : index
    %c1_89 = arith.constant 1 : index
    %c64_90 = arith.constant 64 : index
    %133 = vector.load %arg5[%c0_87, %c0_88, %c1_89, %c64_90] : memref<1x16x2x128xf32, #tpu.memory_space<vmem>>, vector<1x16x1x8xf32>
    %134 = vector.shape_cast %133 : vector<1x16x1x8xf32> to vector<16x8xf32>
    %135 = vector.shape_cast %132 : vector<16x8xf32> to vector<1x16x1x8xf32>
    tpu.vector_store %arg5[%c0_87, %c0_88, %c1_89, %c64_90], %135 {strides = array<i32>} : memref<1x16x2x128xf32, #tpu.memory_space<vmem>>, vector<1x16x1x8xf32>,
    %136 = vector.extract_strided_slice %90 {offsets = [0, 9, 0], sizes = [16, 1, 8], strides = [1, 1, 1]} : vector<16x16x8xf32> to vector<16x1x8xf32>
    %137 = vector.shape_cast %136 : vector<16x1x8xf32> to vector<16x8xf32>
    %c0_91 = arith.constant 0 : index
    %c0_92 = arith.constant 0 : index
    %c1_93 = arith.constant 1 : index
    %c72_94 = arith.constant 72 : index
    %138 = vector.load %arg5[%c0_91, %c0_92, %c1_93, %c72_94] : memref<1x16x2x128xf32, #tpu.memory_space<vmem>>, vector<1x16x1x8xf32>
    %139 = vector.shape_cast %138 : vector<1x16x1x8xf32> to vector<16x8xf32>
    %140 = vector.shape_cast %137 : vector<16x8xf32> to vector<1x16x1x8xf32>
    tpu.vector_store %arg5[%c0_91, %c0_92, %c1_93, %c72_94], %140 {strides = array<i32>} : memref<1x16x2x128xf32, #tpu.memory_space<vmem>>, vector<1x16x1x8xf32>,
    %141 = vector.extract_strided_slice %90 {offsets = [0, 10, 0], sizes = [16, 1, 8], strides = [1, 1, 1]} : vector<16x16x8xf32> to vector<16x1x8xf32>
    %142 = vector.shape_cast %141 : vector<16x1x8xf32> to vector<16x8xf32>
    %c0_95 = arith.constant 0 : index
    %c0_96 = arith.constant 0 : index
    %c1_97 = arith.constant 1 : index
    %c80_98 = arith.constant 80 : index
    %143 = vector.load %arg5[%c0_95, %c0_96, %c1_97, %c80_98] : memref<1x16x2x128xf32, #tpu.memory_space<vmem>>, vector<1x16x1x8xf32>
    %144 = vector.shape_cast %143 : vector<1x16x1x8xf32> to vector<16x8xf32>
    %145 = vector.shape_cast %142 : vector<16x8xf32> to vector<1x16x1x8xf32>
    tpu.vector_store %arg5[%c0_95, %c0_96, %c1_97, %c80_98], %145 {strides = array<i32>} : memref<1x16x2x128xf32, #tpu.memory_space<vmem>>, vector<1x16x1x8xf32>,
    %146 = vector.extract_strided_slice %90 {offsets = [0, 11, 0], sizes = [16, 1, 8], strides = [1, 1, 1]} : vector<16x16x8xf32> to vector<16x1x8xf32>
    %147 = vector.shape_cast %146 : vector<16x1x8xf32> to vector<16x8xf32>
    %c0_99 = arith.constant 0 : index
    %c0_100 = arith.constant 0 : index
    %c1_101 = arith.constant 1 : index
    %c88_102 = arith.constant 88 : index
    %148 = vector.load %arg5[%c0_99, %c0_100, %c1_101, %c88_102] : memref<1x16x2x128xf32, #tpu.memory_space<vmem>>, vector<1x16x1x8xf32>
    %149 = vector.shape_cast %148 : vector<1x16x1x8xf32> to vector<16x8xf32>
    %150 = vector.shape_cast %147 : vector<16x8xf32> to vector<1x16x1x8xf32>
    tpu.vector_store %arg5[%c0_99, %c0_100, %c1_101, %c88_102], %150 {strides = array<i32>} : memref<1x16x2x128xf32, #tpu.memory_space<vmem>>, vector<1x16x1x8xf32>,
    %151 = vector.extract_strided_slice %90 {offsets = [0, 12, 0], sizes = [16, 1, 8], strides = [1, 1, 1]} : vector<16x16x8xf32> to vector<16x1x8xf32>
    %152 = vector.shape_cast %151 : vector<16x1x8xf32> to vector<16x8xf32>
    %c0_103 = arith.constant 0 : index
    %c0_104 = arith.constant 0 : index
    %c1_105 = arith.constant 1 : index
    %c96_106 = arith.constant 96 : index
    %153 = vector.load %arg5[%c0_103, %c0_104, %c1_105, %c96_106] : memref<1x16x2x128xf32, #tpu.memory_space<vmem>>, vector<1x16x1x8xf32>
    %154 = vector.shape_cast %153 : vector<1x16x1x8xf32> to vector<16x8xf32>
    %155 = vector.shape_cast %152 : vector<16x8xf32> to vector<1x16x1x8xf32>
    tpu.vector_store %arg5[%c0_103, %c0_104, %c1_105, %c96_106], %155 {strides = array<i32>} : memref<1x16x2x128xf32, #tpu.memory_space<vmem>>, vector<1x16x1x8xf32>,
    %156 = vector.extract_strided_slice %90 {offsets = [0, 13, 0], sizes = [16, 1, 8], strides = [1, 1, 1]} : vector<16x16x8xf32> to vector<16x1x8xf32>
    %157 = vector.shape_cast %156 : vector<16x1x8xf32> to vector<16x8xf32>
    %c0_107 = arith.constant 0 : index
    %c0_108 = arith.constant 0 : index
    %c1_109 = arith.constant 1 : index
    %c104_110 = arith.constant 104 : index
    %158 = vector.load %arg5[%c0_107, %c0_108, %c1_109, %c104_110] : memref<1x16x2x128xf32, #tpu.memory_space<vmem>>, vector<1x16x1x8xf32>
    %159 = vector.shape_cast %158 : vector<1x16x1x8xf32> to vector<16x8xf32>
    %160 = vector.shape_cast %157 : vector<16x8xf32> to vector<1x16x1x8xf32>
    tpu.vector_store %arg5[%c0_107, %c0_108, %c1_109, %c104_110], %160 {strides = array<i32>} : memref<1x16x2x128xf32, #tpu.memory_space<vmem>>, vector<1x16x1x8xf32>,
    %161 = vector.extract_strided_slice %90 {offsets = [0, 14, 0], sizes = [16, 1, 8], strides = [1, 1, 1]} : vector<16x16x8xf32> to vector<16x1x8xf32>
    %162 = vector.shape_cast %161 : vector<16x1x8xf32> to vector<16x8xf32>
    %c0_111 = arith.constant 0 : index
    %c0_112 = arith.constant 0 : index
    %c1_113 = arith.constant 1 : index
    %c112_114 = arith.constant 112 : index
    %163 = vector.load %arg5[%c0_111, %c0_112, %c1_113, %c112_114] : memref<1x16x2x128xf32, #tpu.memory_space<vmem>>, vector<1x16x1x8xf32>
    %164 = vector.shape_cast %163 : vector<1x16x1x8xf32> to vector<16x8xf32>
    %165 = vector.shape_cast %162 : vector<16x8xf32> to vector<1x16x1x8xf32>
    tpu.vector_store %arg5[%c0_111, %c0_112, %c1_113, %c112_114], %165 {strides = array<i32>} : memref<1x16x2x128xf32, #tpu.memory_space<vmem>>, vector<1x16x1x8xf32>,
    %166 = vector.extract_strided_slice %90 {offsets = [0, 15, 0], sizes = [16, 1, 8], strides = [1, 1, 1]} : vector<16x16x8xf32> to vector<16x1x8xf32>
    %167 = vector.shape_cast %166 : vector<16x1x8xf32> to vector<16x8xf32>
    %c0_115 = arith.constant 0 : index
    %c0_116 = arith.constant 0 : index
    %c1_117 = arith.constant 1 : index
    %c120_118 = arith.constant 120 : index
    %168 = vector.load %arg5[%c0_115, %c0_116, %c1_117, %c120_118] : memref<1x16x2x128xf32, #tpu.memory_space<vmem>>, vector<1x16x1x8xf32>
    %169 = vector.shape_cast %168 : vector<1x16x1x8xf32> to vector<16x8xf32>
    %170 = vector.shape_cast %167 : vector<16x8xf32> to vector<1x16x1x8xf32>
    tpu.vector_store %arg5[%c0_115, %c0_116, %c1_117, %c120_118], %170 {strides = array<i32>} : memref<1x16x2x128xf32, #tpu.memory_space<vmem>>, vector<1x16x1x8xf32>,
    return
  }
  func.func @transform_0(%arg0: i32, %arg1: i32) -> (i32, i32, i32, i32) {
    %c0_i32 = arith.constant 0 : i32
    %c0_i32_0 = arith.constant 0 : i32
    %c0_i32_1 = arith.constant 0 : i32
    return %arg0, %arg1, %c0_i32, %c0_i32_0 : i32, i32, i32, i32
  }
  func.func @transform_1(%arg0: i32, %arg1: i32) -> (i32, i32) {
    %c0_i32 = arith.constant 0 : i32
    %c0_i32_0 = arith.constant 0 : i32
    %c0_i32_1 = arith.constant 0 : i32
    return %c0_i32, %c0_i32_0 : i32, i32
  }
  func.func @transform_2(%arg0: i32, %arg1: i32) -> (i32, i32) {
    %c0_i32 = arith.constant 0 : i32
    %c0_i32_0 = arith.constant 0 : i32
    %c0_i32_1 = arith.constant 0 : i32
    return %c0_i32, %c0_i32_0 : i32, i32
  }
  func.func @transform_3(%arg0: i32, %arg1: i32) -> (i32, i32, i32, i32) {
    %c0_i32 = arith.constant 0 : i32
    %c0_i32_0 = arith.constant 0 : i32
    %c0_i32_1 = arith.constant 0 : i32
    return %arg0, %arg1, %c0_i32, %c0_i32_0 : i32, i32, i32, i32
  }
}

</mosaic_0001>

<llo_original>
// kernel: tpu_custom_call.1
$region0: #{tpu_custom_call.1}
  #allocation0 [shape = 'u32[]', space=smem, size = 0x4, offset = 0x4, fixed_abs, tag = 'smem constant byte address 0x4 - core index']
  #allocation1 [shape = 'u32[144,128]{1,0:T(1,128)}', space=vmem, size = 0x12000, scoped, tag = 'internal scratch']
  %s0 = inlined_call_operand.vmem [shape: f32[2,16,16,8], index: 0, kind: input, shape index: {}]
  %s1 = inlined_call_operand.vmem [shape: f32[8,16], index: 1, kind: input, shape index: {}]
  %s2 = inlined_call_operand.vmem [shape: f32[1,16], index: 2, kind: input, shape index: {}]
  %s3 = inlined_call_operand.hbm [shape: f32[2,16,2,128], index: 3, kind: output, shape index: {}]
  %s4 = sld [smem:[#allocation0]]
  $region45: #{tpu_custom_call.1} parent=0
    _
  %s6 = ssub.s32 1, %s4
  %s7 = scalar_select 0, %s6, %s4
  $region1: #{tpu_custom_call.1} parent=0
    #allocation2 [shape = 'u8[32768]{0}', space=vmem, size = 0x8000, scoped, tag = 'output window, operand 0']
    #allocation3 [shape = 's32[2]{0}', space=sflag, size = 0x8, scoped, tag = 'scoped memory for tpu_custom_call.1']
    %8 = vsyncpa [#allocation3], 0
    %s9 = scalar_lea.sflag [#allocation3], 1
    %10 = vsyncpa %s9, 0
    loop: start=0, step=1, limit=4
    $region2: #{tpu_custom_call.1} parent=1 // loop_pre_header
      _
    $region3: #{tpu_custom_call.1} parent=1 // loop_header
      %s12 = sphi 0, %s16
      %p13 = scmp.ge.s32.totalorder %s12, 4
      %s19 = sphi 0, %s31
      %s20 = sphi 0, %s27
      %s21 = sphi 0, %s19
      %s22 = sphi 0, %s20
      %s23 = sphi 0, %s21
      %s24 = sphi 0, %s22
      %s36 = sphi 0, %s38
      %s39 = sphi 0, %s36
      %s40 = sphi 0, %s39
      %s56 = sphi 0, %s40
      %s60 = sphi 0, %s60
      %s62 = sphi 0, %s60
      %s63 = sphi 0, %s62
      %s77 = sphi 0, %s63
      %s81 = sphi 0, %s81
      %s83 = sphi 0, %s81
      %s84 = sphi 0, %s83
      %s98 = sphi 0, %s84
      %s106 = sphi 0, %s108
      %s109 = sphi 0, %s106
      %s110 = sphi 0, %s109
      %s126 = sphi 0, %s110
    $region4: #{tpu_custom_call.1} parent=1 // loop_header_branch
      %15 = sbr.rel (%p13) target = $region8
    $region5: #{tpu_custom_call.1} parent=1 // loop_body
      %s17 = ssub.s32 %s12, 1
      %s18 = ssub.s32 %s12, 2
      %s25 = sadd.s32 1, %s20
      %p26 = scmp.ge.s32.totalorder %s25, 1
      %s27 = scalar_select %p26, 0, %s25
      %s28 = sadd.s32 1, %s19
      %s29 = scalar_select %p26, %s28, %s19
      %p30 = scmp.ge.s32.totalorder %s29, 2
      %s31 = scalar_select %p30, 0, %s29
      %s32 = ssub.s32 %s19, %s31
      %s33 = ssub.s32 %s20, %s27
      %s34 = sor.u32 %s32, %s33
      %p35 = scmp.eq.s32.totalorder %s34, 0
      %s37 = sadd.s32 %s36, 1
      %s38 = scalar_select %p35, %s36, %s37
      %p41 = pneg %p35
      %p42 = scmp.eq.s32.totalorder %s12, 1
      %p43 = por %p41, %p42
      %p44 = scmp.ne.s32.totalorder %s36, %s39
      %p45 = scmp.eq.s32.totalorder %s12, 0
      %p46 = por %p44, %p45
      %p47 = scmp.ne.s32.totalorder %s36, %s39
      %p48 = scmp.eq.s32.totalorder %s17, 1
      %p49 = por %p47, %p48
      %p50 = scmp.ne.s32.totalorder %s39, %s40
      %p51 = scmp.eq.s32.totalorder %s17, 0
      %p52 = por %p50, %p51
      %p53 = scmp.ne.s32.totalorder %s39, %s40
      %p54 = scmp.eq.s32.totalorder %s18, 1
      %p55 = por %p53, %p54
      %p57 = scmp.ne.s32.totalorder %s40, %s56
      %p58 = scmp.eq.s32.totalorder %s18, 0
      %p59 = por %p57, %p58
      %s61 = sadd.s32 %s60, 1
      %p64 = scmp.eq.s32.totalorder %s12, 1
      %p65 = scmp.ne.s32.totalorder %s60, %s62
      %p66 = scmp.eq.s32.totalorder %s12, 0
      %p67 = por %p65, %p66
      %p68 = scmp.ne.s32.totalorder %s60, %s62
      %p69 = scmp.eq.s32.totalorder %s17, 1
      %p70 = por %p68, %p69
      %p71 = scmp.ne.s32.totalorder %s62, %s63
      %p72 = scmp.eq.s32.totalorder %s17, 0
      %p73 = por %p71, %p72
      %p74 = scmp.ne.s32.totalorder %s62, %s63
      %p75 = scmp.eq.s32.totalorder %s18, 1
      %p76 = por %p74, %p75
      %p78 = scmp.ne.s32.totalorder %s63, %s77
      %p79 = scmp.eq.s32.totalorder %s18, 0
      %p80 = por %p78, %p79
      %s82 = sadd.s32 %s81, 1
      %p85 = scmp.eq.s32.totalorder %s12, 1
      %p86 = scmp.ne.s32.totalorder %s81, %s83
      %p87 = scmp.eq.s32.totalorder %s12, 0
      %p88 = por %p86, %p87
      %p89 = scmp.ne.s32.totalorder %s81, %s83
      %p90 = scmp.eq.s32.totalorder %s17, 1
      %p91 = por %p89, %p90
      %p92 = scmp.ne.s32.totalorder %s83, %s84
      %p93 = scmp.eq.s32.totalorder %s17, 0
      %p94 = por %p92, %p93
      %p95 = scmp.ne.s32.totalorder %s83, %s84
      %p96 = scmp.eq.s32.totalorder %s18, 1
      %p97 = por %p95, %p96
      %p99 = scmp.ne.s32.totalorder %s84, %s98
      %p100 = scmp.eq.s32.totalorder %s18, 0
      %p101 = por %p99, %p100
      %s102 = ssub.s32 %s19, %s31
      %s103 = ssub.s32 %s20, %s27
      %s104 = sor.u32 %s102, %s103
      %p105 = scmp.eq.s32.totalorder %s104, 0
      %s107 = sadd.s32 %s106, 1
      %s108 = scalar_select %p105, %s106, %s107
      %p111 = pneg %p105
      %p112 = scmp.eq.s32.totalorder %s12, 1
      %p113 = por %p111, %p112
      %p114 = scmp.ne.s32.totalorder %s106, %s109
      %p115 = scmp.eq.s32.totalorder %s12, 0
      %p116 = por %p114, %p115
      %p117 = scmp.ne.s32.totalorder %s106, %s109
      %p118 = scmp.eq.s32.totalorder %s17, 1
      %p119 = por %p117, %p118
      %p120 = scmp.ne.s32.totalorder %s109, %s110
      %p121 = scmp.eq.s32.totalorder %s17, 0
      %p122 = por %p120, %p121
      %p123 = scmp.ne.s32.totalorder %s109, %s110
      %p124 = scmp.eq.s32.totalorder %s18, 1
      %p125 = por %p123, %p124
      %p127 = scmp.ne.s32.totalorder %s110, %s126
      %p128 = scmp.eq.s32.totalorder %s18, 0
      %p129 = por %p127, %p128
      %p130 = scmp.le.s32.totalorder 1, %s12
      %p131 = scmp.lt.s32.totalorder %s12, 3
      %p132 = pnand %p130, %p131
      %p133 = pneg %p132
      // Predicated region
      $region9: #{tpu_custom_call.1} parent=5 // pred_check
        _
      $region10: #{tpu_custom_call.1} parent=5 // pred_check_branch
        %135 = sbr.rel (%p132) target = $region12
      $region11: #{tpu_custom_call.1} parent=5 // pred_region
        %s136 = ssub.s32 %s12, 1
        // Predicated region
        $region13: #{tpu_custom_call.1} parent=11 // pred_check
          %p137 = pneg %p73
        $region14: #{tpu_custom_call.1} parent=11 // pred_check_branch
          %139 = sbr.rel (%p137) target = $region16
        $region15: #{tpu_custom_call.1} parent=11 // pred_region
          _
        $region16: #{tpu_custom_call.1} parent=11 // pred_fallthru
          _
        // Predicated region
        $region17: #{tpu_custom_call.1} parent=11 // pred_check
          %p140 = pneg %p94
        $region18: #{tpu_custom_call.1} parent=11 // pred_check_branch
          %142 = sbr.rel (%p140) target = $region20
        $region19: #{tpu_custom_call.1} parent=11 // pred_region
          _
        $region20: #{tpu_custom_call.1} parent=11 // pred_fallthru
          _
      $region12: #{tpu_custom_call.1} parent=5 // pred_fallthru
        _
      %p143 = scmp.lt.s32.totalorder %s12, 2
      // Predicated region
      $region21: #{tpu_custom_call.1} parent=5 // pred_check
        %p144 = pneg %p143
      $region22: #{tpu_custom_call.1} parent=5 // pred_check_branch
        %146 = sbr.rel (%p144) target = $region24
      $region23: #{tpu_custom_call.1} parent=5 // pred_region
        // Predicated region
        $region25: #{tpu_custom_call.1} parent=23 // pred_check
          %p147 = pneg %p46
        $region26: #{tpu_custom_call.1} parent=23 // pred_check_branch
          %149 = sbr.rel (%p147) target = $region28
        $region27: #{tpu_custom_call.1} parent=23 // pred_region
          %s150 = smul.u32 16, %s20
          %p151 = scmp.lt.s32.totalorder %s19, 1
          %s152 = scalar_select %p151, %s19, 1
          %p153 = scmp.lt.s32.totalorder %s150, 15
          %s154 = scalar_select %p153, %s150, 15
          %s155 = smul.addr %s154, 2
          %s156 = smul.addr %s152, 32
          %s157 = sadd.s32 %s155, %s156
          %s158 = smul.addr %s157, 8
          %s159 = scalar_lea.vmem %s0, %s158
          %s160 = smul.u32 16, %s20
        $region28: #{tpu_custom_call.1} parent=23 // pred_fallthru
          _
      $region24: #{tpu_custom_call.1} parent=5 // pred_fallthru
        _
      %p161 = scmp.le.s32.totalorder 1, %s12
      %p162 = scmp.lt.s32.totalorder %s12, 3
      %p163 = pnand %p161, %p162
      %p164 = pneg %p163
      // Predicated region
      $region29: #{tpu_custom_call.1} parent=5 // pred_check
        _
      $region30: #{tpu_custom_call.1} parent=5 // pred_check_branch
        %166 = sbr.rel (%p163) target = $region32
      $region31: #{tpu_custom_call.1} parent=5 // pred_region
        %s167 = ssub.s32 %s12, 1
        %s168 = smul.u32 16, %s22
        %p169 = scmp.lt.s32.totalorder %s21, 1
        %s170 = scalar_select %p169, %s21, 1
        %p171 = scmp.lt.s32.totalorder %s168, 15
        %s172 = scalar_select %p171, %s168, 15
        %s173 = smul.addr %s172, 2
        %s174 = smul.addr %s170, 32
        %s175 = sadd.s32 %s173, %s174
        %s176 = smul.addr %s175, 8
        %s177 = scalar_lea.vmem %s0, %s176
        %p178 = pneg %p52
        %p179 = pneg %p49
        %p180 = pneg %p73
        %p181 = pneg %p70
        %p182 = pneg %p94
        %p183 = pneg %p91
        %p184 = pneg %p122
        %p185 = pneg %p119
        %s186 = sand.u32 %s109, 1
        %s187 = scalar_lea.sflag [#allocation3], %s186
        %s188 = sand.u32 %s109, 1
        %s189 = smul.addr %s188, 32
        %s190 = scalar_lea.vmem [#allocation2], %s189
        %s191 = smul.u32 16, %s22
        %p192 = scmp.lt.s32.totalorder %s21, 1
        %s193 = scalar_select %p192, %s21, 1
        %p194 = scmp.lt.s32.totalorder %s191, 15
        %s195 = scalar_select %p194, %s191, 15
        %s196 = smul.addr %s195, 2
        %s197 = smul.addr %s193, 32
        %s198 = sadd.s32 %s196, %s197
        %s199 = smul.addr %s198, 8
        %s200 = scalar_lea.vmem %s0, %s199
        %s201 = smul.u32 16, %s22
        %s202 = smul.u32 16, %s22
        %v203 = vld [vmem:[%s200] sm:$0xff]
        %v204 = vld [vmem:[%s200 + $0x8] sm:$0xff]
        %v205 = vld [vmem:[%s200 + $0x10] sm:$0xff]
        %v206 = vld [vmem:[%s200 + $0x18] sm:$0xff]
        %v207 = vld [vmem:[%s200 + $0x20] sm:$0xff]
        %v208 = vld [vmem:[%s200 + $0x28] sm:$0xff]
        %v209 = vld [vmem:[%s200 + $0x30] sm:$0xff]
        %v210 = vld [vmem:[%s200 + $0x38] sm:$0xff]
        %v211 = vld [vmem:[%s200 + $0x40] sm:$0xff]
        %v212 = vld [vmem:[%s200 + $0x48] sm:$0xff]
        %v213 = vld [vmem:[%s200 + $0x50] sm:$0xff]
        %v214 = vld [vmem:[%s200 + $0x58] sm:$0xff]
        %v215 = vld [vmem:[%s200 + $0x60] sm:$0xff]
        %v216 = vld [vmem:[%s200 + $0x68] sm:$0xff]
        %v217 = vld [vmem:[%s200 + $0x70] sm:$0xff]
        %v218 = vld [vmem:[%s200 + $0x78] sm:$0xff]
        %v219 = vld [vmem:[%s200 + $0x80] sm:$0xff]
        %v220 = vld [vmem:[%s200 + $0x88] sm:$0xff]
        %v221 = vld [vmem:[%s200 + $0x90] sm:$0xff]
        %v222 = vld [vmem:[%s200 + $0x98] sm:$0xff]
        %v223 = vld [vmem:[%s200 + $0xa0] sm:$0xff]
        %v224 = vld [vmem:[%s200 + $0xa8] sm:$0xff]
        %v225 = vld [vmem:[%s200 + $0xb0] sm:$0xff]
        %v226 = vld [vmem:[%s200 + $0xb8] sm:$0xff]
        %v227 = vld [vmem:[%s200 + $0xc0] sm:$0xff]
        %v228 = vld [vmem:[%s200 + $0xc8] sm:$0xff]
        %v229 = vld [vmem:[%s200 + $0xd0] sm:$0xff]
        %v230 = vld [vmem:[%s200 + $0xd8] sm:$0xff]
        %v231 = vld [vmem:[%s200 + $0xe0] sm:$0xff]
        %v232 = vld [vmem:[%s200 + $0xe8] sm:$0xff]
        %v233 = vld [vmem:[%s200 + $0xf0] sm:$0xff]
        %v234 = vld [vmem:[%s200 + $0xf8] sm:$0xff]
        %v235 = vld [vmem:[%s1] sm:$0xff]
        %v236 = vld [vmem:[%s2] sm:$0x1]
        %v238 = vlaneseq
        %v239 = vshrl.u32 %v238, 7
        %v240 = vsub.s32 0, %v239
        %v241 = vrot.slane %v236, %v240
        %vm243 = vcmask 64512
        %v245 = vsel %vm243, %v203, 0
        %v248 = vsel %vm243, %v204, 0
        %v251 = vsel %vm243, %v205, 0
        %v254 = vsel %vm243, %v206, 0
        %v257 = vsel %vm243, %v207, 0
        %v260 = vsel %vm243, %v208, 0
        %v263 = vsel %vm243, %v209, 0
        %v266 = vsel %vm243, %v210, 0
        %v269 = vsel %vm243, %v211, 0
        %v272 = vsel %vm243, %v212, 0
        %v275 = vsel %vm243, %v213, 0
        %v278 = vsel %vm243, %v214, 0
        %v281 = vsel %vm243, %v215, 0
        %v284 = vsel %vm243, %v216, 0
        %v287 = vsel %vm243, %v217, 0
        %v290 = vsel %vm243, %v218, 0
        %v293 = vsel %vm243, %v219, 0
        %v296 = vsel %vm243, %v220, 0
        %v299 = vsel %vm243, %v221, 0
        %v302 = vsel %vm243, %v222, 0
        %v305 = vsel %vm243, %v223, 0
        %v308 = vsel %vm243, %v224, 0
        %v311 = vsel %vm243, %v225, 0
        %v314 = vsel %vm243, %v226, 0
        %v317 = vsel %vm243, %v227, 0
        %v320 = vsel %vm243, %v228, 0
        %v323 = vsel %vm243, %v229, 0
        %v326 = vsel %vm243, %v230, 0
        %v329 = vsel %vm243, %v231, 0
        %v332 = vsel %vm243, %v232, 0
        %v335 = vsel %vm243, %v233, 0
        %v338 = vsel %vm243, %v234, 0
        %340 = vmatprep.subr.mxu0 0.0
        %341 = vmatpush1.msra.mxu0 %v235
        %342 = vmatprep.subr.mxu0 0.0
        %343 = vmatpush1.msra.mxu0 0.0
        %344 = vmatprep.subr.mxu0 0.0
        %345 = vmatpush1.msra.mxu0 0.0
        %346 = vmatprep.subr.mxu0 0.0
        %347 = vmatpush1.msra.mxu0 0.0
        %348 = vmatprep.subr.mxu0 0.0
        %349 = vmatpush1.msra.mxu0 0.0
        %350 = vmatprep.subr.mxu0 0.0
        %351 = vmatpush1.msra.mxu0 0.0
        %352 = vmatprep.subr.mxu0 0.0
        %353 = vmatpush1.msra.mxu0 0.0
        %354 = vmatprep.subr.mxu0 0.0
        %355 = vmatpush1.msra.mxu0 0.0
        %356 = vmatprep.subr.mxu0 0.0
        %357 = vmatpush1.msra.mxu0 0.0
        %358 = vmatprep.subr.mxu0 0.0
        %359 = vmatpush1.msra.mxu0 0.0
        %360 = vmatprep.subr.mxu0 0.0
        %361 = vmatpush1.msra.mxu0 0.0
        %362 = vmatprep.subr.mxu0 0.0
        %363 = vmatpush1.msra.mxu0 0.0
        %364 = vmatprep.subr.mxu0 0.0
        %365 = vmatpush1.msra.mxu0 0.0
        %366 = vmatprep.subr.mxu0 0.0
        %367 = vmatpush1.msra.mxu0 0.0
        %368 = vmatprep.subr.mxu0 0.0
        %369 = vmatpush1.msra.mxu0 0.0
        %370 = vmatprep.subr.mxu0 0.0
        %371 = vmatpush1.msra.mxu0 0.0
        %372 = vmatprep.subr.mxu0 0.0
        %373 = vmatpush1.msra.mxu0 0.0
        %374 = vmatprep.subr.mxu0 0.0
        %375 = vmatpush1.msra.mxu0 0.0
        %376 = vmatprep.subr.mxu0 0.0
        %377 = vmatpush1.msra.mxu0 0.0
        %378 = vmatprep.subr.mxu0 0.0
        %379 = vmatpush1.msra.mxu0 0.0
        %380 = vmatprep.subr.mxu0 0.0
        %381 = vmatpush1.msra.mxu0 0.0
        %382 = vmatprep.subr.mxu0 0.0
        %383 = vmatpush1.msra.mxu0 0.0
        %384 = vmatprep.subr.mxu0 0.0
        %385 = vmatpush1.msra.mxu0 0.0
        %386 = vmatprep.subr.mxu0 0.0
        %387 = vmatpush1.msra.mxu0 0.0
        %388 = vmatprep.subr.mxu0 0.0
        %389 = vmatpush1.msra.mxu0 0.0
        %390 = vmatprep.subr.mxu0 0.0
        %391 = vmatpush1.msra.mxu0 0.0
        %392 = vmatprep.subr.mxu0 0.0
        %393 = vmatpush1.msra.mxu0 0.0
        %394 = vmatprep.subr.mxu0 0.0
        %395 = vmatpush1.msra.mxu0 0.0
        %396 = vmatprep.subr.mxu0 0.0
        %397 = vmatpush1.msra.mxu0 0.0
        %398 = vmatprep.subr.mxu0 0.0
        %399 = vmatpush1.msra.mxu0 0.0
        %400 = vmatprep.subr.mxu0 0.0
        %401 = vmatpush1.msra.mxu0 0.0
        %402 = vmatprep.subr.mxu0 0.0
        %403 = vmatpush1.msra.mxu0 0.0
        %404 = vmatprep.mubr.f32.mxu0 0.0
        %405 = vmatmul.mubr.f32.gmra.mrb[0].mxu0 %v245
        %v406 = vpop.f32.mrb[0].mxu0
        %v407 = vadd.f32 %v241, %v406
        %v408 = vpop.f32.mrb[0].mxu0
        %409 = vmatprep.mubr.f32.mxu0 0.0
        %410 = vmatmul.mubr.f32.gmra.mrb[0].mxu0 %v248
        %v411 = vpop.f32.mrb[0].mxu0
        %v412 = vadd.f32 %v241, %v411
        %v413 = vpop.f32.mrb[0].mxu0
        %414 = vmatprep.mubr.f32.mxu0 0.0
        %415 = vmatmul.mubr.f32.gmra.mrb[0].mxu0 %v251
        %v416 = vpop.f32.mrb[0].mxu0
        %v417 = vadd.f32 %v241, %v416
        %v418 = vpop.f32.mrb[0].mxu0
        %419 = vmatprep.mubr.f32.mxu0 0.0
        %420 = vmatmul.mubr.f32.gmra.mrb[0].mxu0 %v254
        %v421 = vpop.f32.mrb[0].mxu0
        %v422 = vadd.f32 %v241, %v421
        %v423 = vpop.f32.mrb[0].mxu0
        %424 = vmatprep.mubr.f32.mxu0 0.0
        %425 = vmatmul.mubr.f32.gmra.mrb[0].mxu0 %v257
        %v426 = vpop.f32.mrb[0].mxu0
        %v427 = vadd.f32 %v241, %v426
        %v428 = vpop.f32.mrb[0].mxu0
        %429 = vmatprep.mubr.f32.mxu0 0.0
        %430 = vmatmul.mubr.f32.gmra.mrb[0].mxu0 %v260
        %v431 = vpop.f32.mrb[0].mxu0
        %v432 = vadd.f32 %v241, %v431
        %v433 = vpop.f32.mrb[0].mxu0
        %434 = vmatprep.mubr.f32.mxu0 0.0
        %435 = vmatmul.mubr.f32.gmra.mrb[0].mxu0 %v263
        %v436 = vpop.f32.mrb[0].mxu0
        %v437 = vadd.f32 %v241, %v436
        %v438 = vpop.f32.mrb[0].mxu0
        %439 = vmatprep.mubr.f32.mxu0 0.0
        %440 = vmatmul.mubr.f32.gmra.mrb[0].mxu0 %v266
        %v441 = vpop.f32.mrb[0].mxu0
        %v442 = vadd.f32 %v241, %v441
        %v443 = vpop.f32.mrb[0].mxu0
        %444 = vmatprep.mubr.f32.mxu0 0.0
        %445 = vmatmul.mubr.f32.gmra.mrb[0].mxu0 %v269
        %v446 = vpop.f32.mrb[0].mxu0
        %v447 = vadd.f32 %v241, %v446
        %v448 = vpop.f32.mrb[0].mxu0
        %449 = vmatprep.mubr.f32.mxu0 0.0
        %450 = vmatmul.mubr.f32.gmra.mrb[0].mxu0 %v272
        %v451 = vpop.f32.mrb[0].mxu0
        %v452 = vadd.f32 %v241, %v451
        %v453 = vpop.f32.mrb[0].mxu0
        %454 = vmatprep.mubr.f32.mxu0 0.0
        %455 = vmatmul.mubr.f32.gmra.mrb[0].mxu0 %v275
        %v456 = vpop.f32.mrb[0].mxu0
        %v457 = vadd.f32 %v241, %v456
        %v458 = vpop.f32.mrb[0].mxu0
        %459 = vmatprep.mubr.f32.mxu0 0.0
        %460 = vmatmul.mubr.f32.gmra.mrb[0].mxu0 %v278
        %v461 = vpop.f32.mrb[0].mxu0
        %v462 = vadd.f32 %v241, %v461
        %v463 = vpop.f32.mrb[0].mxu0
        %464 = vmatprep.mubr.f32.mxu0 0.0
        %465 = vmatmul.mubr.f32.gmra.mrb[0].mxu0 %v281
        %v466 = vpop.f32.mrb[0].mxu0
        %v467 = vadd.f32 %v241, %v466
        %v468 = vpop.f32.mrb[0].mxu0
        %469 = vmatprep.mubr.f32.mxu0 0.0
        %470 = vmatmul.mubr.f32.gmra.mrb[0].mxu0 %v284
        %v471 = vpop.f32.mrb[0].mxu0
        %v472 = vadd.f32 %v241, %v471
        %v473 = vpop.f32.mrb[0].mxu0
        %474 = vmatprep.mubr.f32.mxu0 0.0
        %475 = vmatmul.mubr.f32.gmra.mrb[0].mxu0 %v287
        %v476 = vpop.f32.mrb[0].mxu0
        %v477 = vadd.f32 %v241, %v476
        %v478 = vpop.f32.mrb[0].mxu0
        %479 = vmatprep.mubr.f32.mxu0 0.0
        %480 = vmatmul.mubr.f32.gmra.mrb[0].mxu0 %v290
        %v481 = vpop.f32.mrb[0].mxu0
        %v482 = vadd.f32 %v241, %v481
        %v483 = vpop.f32.mrb[0].mxu0
        %484 = vmatprep.mubr.f32.mxu0 0.0
        %485 = vmatmul.mubr.f32.gmra.mrb[0].mxu0 %v293
        %v486 = vpop.f32.mrb[0].mxu0
        %v487 = vadd.f32 %v241, %v486
        %v488 = vpop.f32.mrb[0].mxu0
        %489 = vmatprep.mubr.f32.mxu0 0.0
        %490 = vmatmul.mubr.f32.gmra.mrb[0].mxu0 %v296
        %v491 = vpop.f32.mrb[0].mxu0
        %v492 = vadd.f32 %v241, %v491
        %v493 = vpop.f32.mrb[0].mxu0
        %494 = vmatprep.mubr.f32.mxu0 0.0
        %495 = vmatmul.mubr.f32.gmra.mrb[0].mxu0 %v299
        %v496 = vpop.f32.mrb[0].mxu0
        %v497 = vadd.f32 %v241, %v496
        %v498 = vpop.f32.mrb[0].mxu0
        %499 = vmatprep.mubr.f32.mxu0 0.0
        %500 = vmatmul.mubr.f32.gmra.mrb[0].mxu0 %v302
        %v501 = vpop.f32.mrb[0].mxu0
        %v502 = vadd.f32 %v241, %v501
        %v503 = vpop.f32.mrb[0].mxu0
        %504 = vmatprep.mubr.f32.mxu0 0.0
        %505 = vmatmul.mubr.f32.gmra.mrb[0].mxu0 %v305
        %v506 = vpop.f32.mrb[0].mxu0
        %v507 = vadd.f32 %v241, %v506
        %v508 = vpop.f32.mrb[0].mxu0
        %509 = vmatprep.mubr.f32.mxu0 0.0
        %510 = vmatmul.mubr.f32.gmra.mrb[0].mxu0 %v308
        %v511 = vpop.f32.mrb[0].mxu0
        %v512 = vadd.f32 %v241, %v511
        %v513 = vpop.f32.mrb[0].mxu0
        %514 = vmatprep.mubr.f32.mxu0 0.0
        %515 = vmatmul.mubr.f32.gmra.mrb[0].mxu0 %v311
        %v516 = vpop.f32.mrb[0].mxu0
        %v517 = vadd.f32 %v241, %v516
        %v518 = vpop.f32.mrb[0].mxu0
        %519 = vmatprep.mubr.f32.mxu0 0.0
        %520 = vmatmul.mubr.f32.gmra.mrb[0].mxu0 %v314
        %v521 = vpop.f32.mrb[0].mxu0
        %v522 = vadd.f32 %v241, %v521
        %v523 = vpop.f32.mrb[0].mxu0
        %524 = vmatprep.mubr.f32.mxu0 0.0
        %525 = vmatmul.mubr.f32.gmra.mrb[0].mxu0 %v317
        %v526 = vpop.f32.mrb[0].mxu0
        %v527 = vadd.f32 %v241, %v526
        %v528 = vpop.f32.mrb[0].mxu0
        %529 = vmatprep.mubr.f32.mxu0 0.0
        %530 = vmatmul.mubr.f32.gmra.mrb[0].mxu0 %v320
        %v531 = vpop.f32.mrb[0].mxu0
        %v532 = vadd.f32 %v241, %v531
        %v533 = vpop.f32.mrb[0].mxu0
        %534 = vmatprep.mubr.f32.mxu0 0.0
        %535 = vmatmul.mubr.f32.gmra.mrb[0].mxu0 %v323
        %v536 = vpop.f32.mrb[0].mxu0
        %v537 = vadd.f32 %v241, %v536
        %v538 = vpop.f32.mrb[0].mxu0
        %539 = vmatprep.mubr.f32.mxu0 0.0
        %540 = vmatmul.mubr.f32.gmra.mrb[0].mxu0 %v326
        %v541 = vpop.f32.mrb[0].mxu0
        %v542 = vadd.f32 %v241, %v541
        %v543 = vpop.f32.mrb[0].mxu0
        %544 = vmatprep.mubr.f32.mxu0 0.0
        %545 = vmatmul.mubr.f32.gmra.mrb[0].mxu0 %v329
        %v546 = vpop.f32.mrb[0].mxu0
        %v547 = vadd.f32 %v241, %v546
        %v548 = vpop.f32.mrb[0].mxu0
        %549 = vmatprep.mubr.f32.mxu0 0.0
        %550 = vmatmul.mubr.f32.gmra.mrb[0].mxu0 %v332
        %v551 = vpop.f32.mrb[0].mxu0
        %v552 = vadd.f32 %v241, %v551
        %v553 = vpop.f32.mrb[0].mxu0
        %554 = vmatprep.mubr.f32.mxu0 0.0
        %555 = vmatmul.mubr.f32.gmra.mrb[0].mxu0 %v335
        %v556 = vpop.f32.mrb[0].mxu0
        %v557 = vadd.f32 %v241, %v556
        %v558 = vpop.f32.mrb[0].mxu0
        %559 = vmatprep.mubr.f32.mxu0 0.0
        %560 = vmatmul.mubr.f32.gmra.mrb[0].mxu0 %v338
        %v561 = vpop.f32.mrb[0].mxu0
        %v562 = vadd.f32 %v241, %v561
        %v563 = vpop.f32.mrb[0].mxu0
        %564 = vdwg.mxu0
        %vm565 = vcmask 57344
        %566 = vst.msk [vmem:[%s190] sm:$0x1] %vm565, %v407
        %567 = vst.msk [vmem:[%s190 + $0x2] sm:$0x1] %vm565, %v417
        %568 = vst.msk [vmem:[%s190 + $0x4] sm:$0x1] %vm565, %v427
        %569 = vst.msk [vmem:[%s190 + $0x6] sm:$0x1] %vm565, %v437
        %570 = vst.msk [vmem:[%s190 + $0x8] sm:$0x1] %vm565, %v447
        %571 = vst.msk [vmem:[%s190 + $0xa] sm:$0x1] %vm565, %v457
        %572 = vst.msk [vmem:[%s190 + $0xc] sm:$0x1] %vm565, %v467
        %573 = vst.msk [vmem:[%s190 + $0xe] sm:$0x1] %vm565, %v477
        %574 = vst.msk [vmem:[%s190 + $0x10] sm:$0x1] %vm565, %v487
        %575 = vst.msk [vmem:[%s190 + $0x12] sm:$0x1] %vm565, %v497
        %576 = vst.msk [vmem:[%s190 + $0x14] sm:$0x1] %vm565, %v507
        %577 = vst.msk [vmem:[%s190 + $0x16] sm:$0x1] %vm565, %v517
        %578 = vst.msk [vmem:[%s190 + $0x18] sm:$0x1] %vm565, %v527
        %579 = vst.msk [vmem:[%s190 + $0x1a] sm:$0x1] %vm565, %v537
        %580 = vst.msk [vmem:[%s190 + $0x1c] sm:$0x1] %vm565, %v547
        %581 = vst.msk [vmem:[%s190 + $0x1e] sm:$0x1] %vm565, %v557
        %598 = vrot.lane.b32.xlu0 %v407, 8
        %v599 = vpop.permute.xlu0 %598
        %600 = vrot.lane.b32.xlu0 %v417, 8
        %v601 = vpop.permute.xlu0 %600
        %602 = vrot.lane.b32.xlu0 %v427, 8
        %v603 = vpop.permute.xlu0 %602
        %604 = vrot.lane.b32.xlu0 %v437, 8
        %v605 = vpop.permute.xlu0 %604
        %606 = vrot.lane.b32.xlu0 %v447, 8
        %v607 = vpop.permute.xlu0 %606
        %608 = vrot.lane.b32.xlu0 %v457, 8
        %v609 = vpop.permute.xlu0 %608
        %610 = vrot.lane.b32.xlu0 %v467, 8
        %v611 = vpop.permute.xlu0 %610
        %612 = vrot.lane.b32.xlu0 %v477, 8
        %v613 = vpop.permute.xlu0 %612
        %614 = vrot.lane.b32.xlu0 %v487, 8
        %v615 = vpop.permute.xlu0 %614
        %616 = vrot.lane.b32.xlu0 %v497, 8
        %v617 = vpop.permute.xlu0 %616
        %618 = vrot.lane.b32.xlu0 %v507, 8
        %v619 = vpop.permute.xlu0 %618
        %620 = vrot.lane.b32.xlu0 %v517, 8
        %v621 = vpop.permute.xlu0 %620
        %622 = vrot.lane.b32.xlu0 %v527, 8
        %v623 = vpop.permute.xlu0 %622
        %624 = vrot.lane.b32.xlu0 %v537, 8
        %v625 = vpop.permute.xlu0 %624
        %626 = vrot.lane.b32.xlu0 %v547, 8
        %v627 = vpop.permute.xlu0 %626
        %628 = vrot.lane.b32.xlu0 %v557, 8
        %v629 = vpop.permute.xlu0 %628
        %vm646 = vcmask 123969
        %647 = vst.msk [vmem:[%s190 - $0x1] sm:$0x2] %vm646, %v599
        %648 = vst.msk [vmem:[%s190 + $0x1] sm:$0x2] %vm646, %v601
        %649 = vst.msk [vmem:[%s190 + $0x3] sm:$0x2] %vm646, %v603
        %650 = vst.msk [vmem:[%s190 + $0x5] sm:$0x2] %vm646, %v605
        %651 = vst.msk [vmem:[%s190 + $0x7] sm:$0x2] %vm646, %v607
        %652 = vst.msk [vmem:[%s190 + $0x9] sm:$0x2] %vm646, %v609
        %653 = vst.msk [vmem:[%s190 + $0xb] sm:$0x2] %vm646, %v611
        %654 = vst.msk [vmem:[%s190 + $0xd] sm:$0x2] %vm646, %v613
        %655 = vst.msk [vmem:[%s190 + $0xf] sm:$0x2] %vm646, %v615
        %656 = vst.msk [vmem:[%s190 + $0x11] sm:$0x2] %vm646, %v617
        %657 = vst.msk [vmem:[%s190 + $0x13] sm:$0x2] %vm646, %v619
        %658 = vst.msk [vmem:[%s190 + $0x15] sm:$0x2] %vm646, %v621
        %659 = vst.msk [vmem:[%s190 + $0x17] sm:$0x2] %vm646, %v623
        %660 = vst.msk [vmem:[%s190 + $0x19] sm:$0x2] %vm646, %v625
        %661 = vst.msk [vmem:[%s190 + $0x1b] sm:$0x2] %vm646, %v627
        %662 = vst.msk [vmem:[%s190 + $0x1d] sm:$0x2] %vm646, %v629
        %663 = vrot.lane.b32.xlu0 %v407, 16
        %v664 = vpop.permute.xlu0 %663
        %665 = vrot.lane.b32.xlu0 %v417, 16
        %v666 = vpop.permute.xlu0 %665
        %667 = vrot.lane.b32.xlu0 %v427, 16
        %v668 = vpop.permute.xlu0 %667
        %669 = vrot.lane.b32.xlu0 %v437, 16
        %v670 = vpop.permute.xlu0 %669
        %671 = vrot.lane.b32.xlu0 %v447, 16
        %v672 = vpop.permute.xlu0 %671
        %673 = vrot.lane.b32.xlu0 %v457, 16
        %v674 = vpop.permute.xlu0 %673
        %675 = vrot.lane.b32.xlu0 %v467, 16
        %v676 = vpop.permute.xlu0 %675
        %677 = vrot.lane.b32.xlu0 %v477, 16
        %v678 = vpop.permute.xlu0 %677
        %679 = vrot.lane.b32.xlu0 %v487, 16
        %v680 = vpop.permute.xlu0 %679
        %681 = vrot.lane.b32.xlu0 %v497, 16
        %v682 = vpop.permute.xlu0 %681
        %683 = vrot.lane.b32.xlu0 %v507, 16
        %v684 = vpop.permute.xlu0 %683
        %685 = vrot.lane.b32.xlu0 %v517, 16
        %v686 = vpop.permute.xlu0 %685
        %687 = vrot.lane.b32.xlu0 %v527, 16
        %v688 = vpop.permute.xlu0 %687
        %689 = vrot.lane.b32.xlu0 %v537, 16
        %v690 = vpop.permute.xlu0 %689
        %691 = vrot.lane.b32.xlu0 %v547, 16
        %v692 = vpop.permute.xlu0 %691
        %693 = vrot.lane.b32.xlu0 %v557, 16
        %v694 = vpop.permute.xlu0 %693
        %vm711 = vcmask 190594
        %712 = vst.msk [vmem:[%s190 - $0x2] sm:$0x4] %vm711, %v664
        %713 = vst.msk [vmem:[%s190] sm:$0x4] %vm711, %v666
        %714 = vst.msk [vmem:[%s190 + $0x2] sm:$0x4] %vm711, %v668
        %715 = vst.msk [vmem:[%s190 + $0x4] sm:$0x4] %vm711, %v670
        %716 = vst.msk [vmem:[%s190 + $0x6] sm:$0x4] %vm711, %v672
        %717 = vst.msk [vmem:[%s190 + $0x8] sm:$0x4] %vm711, %v674
        %718 = vst.msk [vmem:[%s190 + $0xa] sm:$0x4] %vm711, %v676
        %719 = vst.msk [vmem:[%s190 + $0xc] sm:$0x4] %vm711, %v678
        %720 = vst.msk [vmem:[%s190 + $0xe] sm:$0x4] %vm711, %v680
        %721 = vst.msk [vmem:[%s190 + $0x10] sm:$0x4] %vm711, %v682
        %722 = vst.msk [vmem:[%s190 + $0x12] sm:$0x4] %vm711, %v684
        %723 = vst.msk [vmem:[%s190 + $0x14] sm:$0x4] %vm711, %v686
        %724 = vst.msk [vmem:[%s190 + $0x16] sm:$0x4] %vm711, %v688
        %725 = vst.msk [vmem:[%s190 + $0x18] sm:$0x4] %vm711, %v690
        %726 = vst.msk [vmem:[%s190 + $0x1a] sm:$0x4] %vm711, %v692
        %727 = vst.msk [vmem:[%s190 + $0x1c] sm:$0x4] %vm711, %v694
        %728 = vrot.lane.b32.xlu0 %v407, 24
        %v729 = vpop.permute.xlu0 %728
        %730 = vrot.lane.b32.xlu0 %v417, 24
        %v731 = vpop.permute.xlu0 %730
        %732 = vrot.lane.b32.xlu0 %v427, 24
        %v733 = vpop.permute.xlu0 %732
        %734 = vrot.lane.b32.xlu0 %v437, 24
        %v735 = vpop.permute.xlu0 %734
        %736 = vrot.lane.b32.xlu0 %v447, 24
        %v737 = vpop.permute.xlu0 %736
        %738 = vrot.lane.b32.xlu0 %v457, 24
        %v739 = vpop.permute.xlu0 %738
        %740 = vrot.lane.b32.xlu0 %v467, 24
        %v741 = vpop.permute.xlu0 %740
        %742 = vrot.lane.b32.xlu0 %v477, 24
        %v743 = vpop.permute.xlu0 %742
        %744 = vrot.lane.b32.xlu0 %v487, 24
        %v745 = vpop.permute.xlu0 %744
        %746 = vrot.lane.b32.xlu0 %v497, 24
        %v747 = vpop.permute.xlu0 %746
        %748 = vrot.lane.b32.xlu0 %v507, 24
        %v749 = vpop.permute.xlu0 %748
        %750 = vrot.lane.b32.xlu0 %v517, 24
        %v751 = vpop.permute.xlu0 %750
        %752 = vrot.lane.b32.xlu0 %v527, 24
        %v753 = vpop.permute.xlu0 %752
        %754 = vrot.lane.b32.xlu0 %v537, 24
        %v755 = vpop.permute.xlu0 %754
        %756 = vrot.lane.b32.xlu0 %v547, 24
        %v757 = vpop.permute.xlu0 %756
        %758 = vrot.lane.b32.xlu0 %v557, 24
        %v759 = vpop.permute.xlu0 %758
        %vm776 = vcmask 257219
        %777 = vst.msk [vmem:[%s190 - $0x3] sm:$0x8] %vm776, %v729
        %778 = vst.msk [vmem:[%s190 - $0x1] sm:$0x8] %vm776, %v731
        %779 = vst.msk [vmem:[%s190 + $0x1] sm:$0x8] %vm776, %v733
        %780 = vst.msk [vmem:[%s190 + $0x3] sm:$0x8] %vm776, %v735
        %781 = vst.msk [vmem:[%s190 + $0x5] sm:$0x8] %vm776, %v737
        %782 = vst.msk [vmem:[%s190 + $0x7] sm:$0x8] %vm776, %v739
        %783 = vst.msk [vmem:[%s190 + $0x9] sm:$0x8] %vm776, %v741
        %784 = vst.msk [vmem:[%s190 + $0xb] sm:$0x8] %vm776, %v743
        %785 = vst.msk [vmem:[%s190 + $0xd] sm:$0x8] %vm776, %v745
        %786 = vst.msk [vmem:[%s190 + $0xf] sm:$0x8] %vm776, %v747
        %787 = vst.msk [vmem:[%s190 + $0x11] sm:$0x8] %vm776, %v749
        %788 = vst.msk [vmem:[%s190 + $0x13] sm:$0x8] %vm776, %v751
        %789 = vst.msk [vmem:[%s190 + $0x15] sm:$0x8] %vm776, %v753
        %790 = vst.msk [vmem:[%s190 + $0x17] sm:$0x8] %vm776, %v755
        %791 = vst.msk [vmem:[%s190 + $0x19] sm:$0x8] %vm776, %v757
        %792 = vst.msk [vmem:[%s190 + $0x1b] sm:$0x8] %vm776, %v759
        %793 = vrot.lane.b32.xlu0 %v407, 32
        %v794 = vpop.permute.xlu0 %793
        %795 = vrot.lane.b32.xlu0 %v417, 32
        %v796 = vpop.permute.xlu0 %795
        %797 = vrot.lane.b32.xlu0 %v427, 32
        %v798 = vpop.permute.xlu0 %797
        %799 = vrot.lane.b32.xlu0 %v437, 32
        %v800 = vpop.permute.xlu0 %799
        %801 = vrot.lane.b32.xlu0 %v447, 32
        %v802 = vpop.permute.xlu0 %801
        %803 = vrot.lane.b32.xlu0 %v457, 32
        %v804 = vpop.permute.xlu0 %803
        %805 = vrot.lane.b32.xlu0 %v467, 32
        %v806 = vpop.permute.xlu0 %805
        %807 = vrot.lane.b32.xlu0 %v477, 32
        %v808 = vpop.permute.xlu0 %807
        %809 = vrot.lane.b32.xlu0 %v487, 32
        %v810 = vpop.permute.xlu0 %809
        %811 = vrot.lane.b32.xlu0 %v497, 32
        %v812 = vpop.permute.xlu0 %811
        %813 = vrot.lane.b32.xlu0 %v507, 32
        %v814 = vpop.permute.xlu0 %813
        %815 = vrot.lane.b32.xlu0 %v517, 32
        %v816 = vpop.permute.xlu0 %815
        %817 = vrot.lane.b32.xlu0 %v527, 32
        %v818 = vpop.permute.xlu0 %817
        %819 = vrot.lane.b32.xlu0 %v537, 32
        %v820 = vpop.permute.xlu0 %819
        %821 = vrot.lane.b32.xlu0 %v547, 32
        %v822 = vpop.permute.xlu0 %821
        %823 = vrot.lane.b32.xlu0 %v557, 32
        %v824 = vpop.permute.xlu0 %823
        %vm841 = vcmask 323844
        %842 = vst.msk [vmem:[%s190 - $0x4] sm:$0x10] %vm841, %v794
        %843 = vst.msk [vmem:[%s190 - $0x2] sm:$0x10] %vm841, %v796
        %844 = vst.msk [vmem:[%s190] sm:$0x10] %vm841, %v798
        %845 = vst.msk [vmem:[%s190 + $0x2] sm:$0x10] %vm841, %v800
        %846 = vst.msk [vmem:[%s190 + $0x4] sm:$0x10] %vm841, %v802
        %847 = vst.msk [vmem:[%s190 + $0x6] sm:$0x10] %vm841, %v804
        %848 = vst.msk [vmem:[%s190 + $0x8] sm:$0x10] %vm841, %v806
        %849 = vst.msk [vmem:[%s190 + $0xa] sm:$0x10] %vm841, %v808
        %850 = vst.msk [vmem:[%s190 + $0xc] sm:$0x10] %vm841, %v810
        %851 = vst.msk [vmem:[%s190 + $0xe] sm:$0x10] %vm841, %v812
        %852 = vst.msk [vmem:[%s190 + $0x10] sm:$0x10] %vm841, %v814
        %853 = vst.msk [vmem:[%s190 + $0x12] sm:$0x10] %vm841, %v816
        %854 = vst.msk [vmem:[%s190 + $0x14] sm:$0x10] %vm841, %v818
        %855 = vst.msk [vmem:[%s190 + $0x16] sm:$0x10] %vm841, %v820
        %856 = vst.msk [vmem:[%s190 + $0x18] sm:$0x10] %vm841, %v822
        %857 = vst.msk [vmem:[%s190 + $0x1a] sm:$0x10] %vm841, %v824
        %858 = vrot.lane.b32.xlu0 %v407, 40
        %v859 = vpop.permute.xlu0 %858
        %860 = vrot.lane.b32.xlu0 %v417, 40
        %v861 = vpop.permute.xlu0 %860
        %862 = vrot.lane.b32.xlu0 %v427, 40
        %v863 = vpop.permute.xlu0 %862
        %864 = vrot.lane.b32.xlu0 %v437, 40
        %v865 = vpop.permute.xlu0 %864
        %866 = vrot.lane.b32.xlu0 %v447, 40
        %v867 = vpop.permute.xlu0 %866
        %868 = vrot.lane.b32.xlu0 %v457, 40
        %v869 = vpop.permute.xlu0 %868
        %870 = vrot.lane.b32.xlu0 %v467, 40
        %v871 = vpop.permute.xlu0 %870
        %872 = vrot.lane.b32.xlu0 %v477, 40
        %v873 = vpop.permute.xlu0 %872
        %874 = vrot.lane.b32.xlu0 %v487, 40
        %v875 = vpop.permute.xlu0 %874
        %876 = vrot.lane.b32.xlu0 %v497, 40
        %v877 = vpop.permute.xlu0 %876
        %878 = vrot.lane.b32.xlu0 %v507, 40
        %v879 = vpop.permute.xlu0 %878
        %880 = vrot.lane.b32.xlu0 %v517, 40
        %v881 = vpop.permute.xlu0 %880
        %882 = vrot.lane.b32.xlu0 %v527, 40
        %v883 = vpop.permute.xlu0 %882
        %884 = vrot.lane.b32.xlu0 %v537, 40
        %v885 = vpop.permute.xlu0 %884
        %886 = vrot.lane.b32.xlu0 %v547, 40
        %v887 = vpop.permute.xlu0 %886
        %888 = vrot.lane.b32.xlu0 %v557, 40
        %v889 = vpop.permute.xlu0 %888
        %vm906 = vcmask 390469
        %907 = vst.msk [vmem:[%s190 - $0x5] sm:$0x20] %vm906, %v859
        %908 = vst.msk [vmem:[%s190 - $0x3] sm:$0x20] %vm906, %v861
        %909 = vst.msk [vmem:[%s190 - $0x1] sm:$0x20] %vm906, %v863
        %910 = vst.msk [vmem:[%s190 + $0x1] sm:$0x20] %vm906, %v865
        %911 = vst.msk [vmem:[%s190 + $0x3] sm:$0x20] %vm906, %v867
        %912 = vst.msk [vmem:[%s190 + $0x5] sm:$0x20] %vm906, %v869
        %913 = vst.msk [vmem:[%s190 + $0x7] sm:$0x20] %vm906, %v871
        %914 = vst.msk [vmem:[%s190 + $0x9] sm:$0x20] %vm906, %v873
        %915 = vst.msk [vmem:[%s190 + $0xb] sm:$0x20] %vm906, %v875
        %916 = vst.msk [vmem:[%s190 + $0xd] sm:$0x20] %vm906, %v877
        %917 = vst.msk [vmem:[%s190 + $0xf] sm:$0x20] %vm906, %v879
        %918 = vst.msk [vmem:[%s190 + $0x11] sm:$0x20] %vm906, %v881
        %919 = vst.msk [vmem:[%s190 + $0x13] sm:$0x20] %vm906, %v883
        %920 = vst.msk [vmem:[%s190 + $0x15] sm:$0x20] %vm906, %v885
        %921 = vst.msk [vmem:[%s190 + $0x17] sm:$0x20] %vm906, %v887
        %922 = vst.msk [vmem:[%s190 + $0x19] sm:$0x20] %vm906, %v889
        %923 = vrot.lane.b32.xlu0 %v407, 48
        %v924 = vpop.permute.xlu0 %923
        %925 = vrot.lane.b32.xlu0 %v417, 48
        %v926 = vpop.permute.xlu0 %925
        %927 = vrot.lane.b32.xlu0 %v427, 48
        %v928 = vpop.permute.xlu0 %927
        %929 = vrot.lane.b32.xlu0 %v437, 48
        %v930 = vpop.permute.xlu0 %929
        %931 = vrot.lane.b32.xlu0 %v447, 48
        %v932 = vpop.permute.xlu0 %931
        %933 = vrot.lane.b32.xlu0 %v457, 48
        %v934 = vpop.permute.xlu0 %933
        %935 = vrot.lane.b32.xlu0 %v467, 48
        %v936 = vpop.permute.xlu0 %935
        %937 = vrot.lane.b32.xlu0 %v477, 48
        %v938 = vpop.permute.xlu0 %937
        %939 = vrot.lane.b32.xlu0 %v487, 48
        %v940 = vpop.permute.xlu0 %939
        %941 = vrot.lane.b32.xlu0 %v497, 48
        %v942 = vpop.permute.xlu0 %941
        %943 = vrot.lane.b32.xlu0 %v507, 48
        %v944 = vpop.permute.xlu0 %943
        %945 = vrot.lane.b32.xlu0 %v517, 48
        %v946 = vpop.permute.xlu0 %945
        %947 = vrot.lane.b32.xlu0 %v527, 48
        %v948 = vpop.permute.xlu0 %947
        %949 = vrot.lane.b32.xlu0 %v537, 48
        %v950 = vpop.permute.xlu0 %949
        %951 = vrot.lane.b32.xlu0 %v547, 48
        %v952 = vpop.permute.xlu0 %951
        %953 = vrot.lane.b32.xlu0 %v557, 48
        %v954 = vpop.permute.xlu0 %953
        %vm971 = vcmask 457094
        %972 = vst.msk [vmem:[%s190 - $0x6] sm:$0x40] %vm971, %v924
        %973 = vst.msk [vmem:[%s190 - $0x4] sm:$0x40] %vm971, %v926
        %974 = vst.msk [vmem:[%s190 - $0x2] sm:$0x40] %vm971, %v928
        %975 = vst.msk [vmem:[%s190] sm:$0x40] %vm971, %v930
        %976 = vst.msk [vmem:[%s190 + $0x2] sm:$0x40] %vm971, %v932
        %977 = vst.msk [vmem:[%s190 + $0x4] sm:$0x40] %vm971, %v934
        %978 = vst.msk [vmem:[%s190 + $0x6] sm:$0x40] %vm971, %v936
        %979 = vst.msk [vmem:[%s190 + $0x8] sm:$0x40] %vm971, %v938
        %980 = vst.msk [vmem:[%s190 + $0xa] sm:$0x40] %vm971, %v940
        %981 = vst.msk [vmem:[%s190 + $0xc] sm:$0x40] %vm971, %v942
        %982 = vst.msk [vmem:[%s190 + $0xe] sm:$0x40] %vm971, %v944
        %983 = vst.msk [vmem:[%s190 + $0x10] sm:$0x40] %vm971, %v946
        %984 = vst.msk [vmem:[%s190 + $0x12] sm:$0x40] %vm971, %v948
        %985 = vst.msk [vmem:[%s190 + $0x14] sm:$0x40] %vm971, %v950
        %986 = vst.msk [vmem:[%s190 + $0x16] sm:$0x40] %vm971, %v952
        %987 = vst.msk [vmem:[%s190 + $0x18] sm:$0x40] %vm971, %v954
        %988 = vrot.lane.b32.xlu0 %v407, 56
        %v989 = vpop.permute.xlu0 %988
        %990 = vrot.lane.b32.xlu0 %v417, 56
        %v991 = vpop.permute.xlu0 %990
        %992 = vrot.lane.b32.xlu0 %v427, 56
        %v993 = vpop.permute.xlu0 %992
        %994 = vrot.lane.b32.xlu0 %v437, 56
        %v995 = vpop.permute.xlu0 %994
        %996 = vrot.lane.b32.xlu0 %v447, 56
        %v997 = vpop.permute.xlu0 %996
        %998 = vrot.lane.b32.xlu0 %v457, 56
        %v999 = vpop.permute.xlu0 %998
        %1000 = vrot.lane.b32.xlu0 %v467, 56
        %v1001 = vpop.permute.xlu0 %1000
        %1002 = vrot.lane.b32.xlu0 %v477, 56
        %v1003 = vpop.permute.xlu0 %1002
        %1004 = vrot.lane.b32.xlu0 %v487, 56
        %v1005 = vpop.permute.xlu0 %1004
        %1006 = vrot.lane.b32.xlu0 %v497, 56
        %v1007 = vpop.permute.xlu0 %1006
        %1008 = vrot.lane.b32.xlu0 %v507, 56
        %v1009 = vpop.permute.xlu0 %1008
        %1010 = vrot.lane.b32.xlu0 %v517, 56
        %v1011 = vpop.permute.xlu0 %1010
        %1012 = vrot.lane.b32.xlu0 %v527, 56
        %v1013 = vpop.permute.xlu0 %1012
        %1014 = vrot.lane.b32.xlu0 %v537, 56
        %v1015 = vpop.permute.xlu0 %1014
        %1016 = vrot.lane.b32.xlu0 %v547, 56
        %v1017 = vpop.permute.xlu0 %1016
        %1018 = vrot.lane.b32.xlu0 %v557, 56
        %v1019 = vpop.permute.xlu0 %1018
        %vm1036 = vcmask 523719
        %1037 = vst.msk [vmem:[%s190 - $0x7] sm:$0x80] %vm1036, %v989
        %1038 = vst.msk [vmem:[%s190 - $0x5] sm:$0x80] %vm1036, %v991
        %1039 = vst.msk [vmem:[%s190 - $0x3] sm:$0x80] %vm1036, %v993
        %1040 = vst.msk [vmem:[%s190 - $0x1] sm:$0x80] %vm1036, %v995
        %1041 = vst.msk [vmem:[%s190 + $0x1] sm:$0x80] %vm1036, %v997
        %1042 = vst.msk [vmem:[%s190 + $0x3] sm:$0x80] %vm1036, %v999
        %1043 = vst.msk [vmem:[%s190 + $0x5] sm:$0x80] %vm1036, %v1001
        %1044 = vst.msk [vmem:[%s190 + $0x7] sm:$0x80] %vm1036, %v1003
        %1045 = vst.msk [vmem:[%s190 + $0x9] sm:$0x80] %vm1036, %v1005
        %1046 = vst.msk [vmem:[%s190 + $0xb] sm:$0x80] %vm1036, %v1007
        %1047 = vst.msk [vmem:[%s190 + $0xd] sm:$0x80] %vm1036, %v1009
        %1048 = vst.msk [vmem:[%s190 + $0xf] sm:$0x80] %vm1036, %v1011
        %1049 = vst.msk [vmem:[%s190 + $0x11] sm:$0x80] %vm1036, %v1013
        %1050 = vst.msk [vmem:[%s190 + $0x13] sm:$0x80] %vm1036, %v1015
        %1051 = vst.msk [vmem:[%s190 + $0x15] sm:$0x80] %vm1036, %v1017
        %1052 = vst.msk [vmem:[%s190 + $0x17] sm:$0x80] %vm1036, %v1019
        %1069 = vrot.lane.b32.xlu0 %v412, 64
        %v1070 = vpop.permute.xlu0 %1069
        %1071 = vrot.lane.b32.xlu0 %v422, 64
        %v1072 = vpop.permute.xlu0 %1071
        %1073 = vrot.lane.b32.xlu0 %v432, 64
        %v1074 = vpop.permute.xlu0 %1073
        %1075 = vrot.lane.b32.xlu0 %v442, 64
        %v1076 = vpop.permute.xlu0 %1075
        %1077 = vrot.lane.b32.xlu0 %v452, 64
        %v1078 = vpop.permute.xlu0 %1077
        %1079 = vrot.lane.b32.xlu0 %v462, 64
        %v1080 = vpop.permute.xlu0 %1079
        %1081 = vrot.lane.b32.xlu0 %v472, 64
        %v1082 = vpop.permute.xlu0 %1081
        %1083 = vrot.lane.b32.xlu0 %v482, 64
        %v1084 = vpop.permute.xlu0 %1083
        %1085 = vrot.lane.b32.xlu0 %v492, 64
        %v1086 = vpop.permute.xlu0 %1085
        %1087 = vrot.lane.b32.xlu0 %v502, 64
        %v1088 = vpop.permute.xlu0 %1087
        %1089 = vrot.lane.b32.xlu0 %v512, 64
        %v1090 = vpop.permute.xlu0 %1089
        %1091 = vrot.lane.b32.xlu0 %v522, 64
        %v1092 = vpop.permute.xlu0 %1091
        %1093 = vrot.lane.b32.xlu0 %v532, 64
        %v1094 = vpop.permute.xlu0 %1093
        %1095 = vrot.lane.b32.xlu0 %v542, 64
        %v1096 = vpop.permute.xlu0 %1095
        %1097 = vrot.lane.b32.xlu0 %v552, 64
        %v1098 = vpop.permute.xlu0 %1097
        %1099 = vrot.lane.b32.xlu0 %v562, 64
        %v1100 = vpop.permute.xlu0 %1099
        %vm1117 = vcmask 582144
        %1118 = vst.msk [vmem:[%s190] sm:$0x1] %vm1117, %v1070
        %1119 = vst.msk [vmem:[%s190 + $0x2] sm:$0x1] %vm1117, %v1072
        %1120 = vst.msk [vmem:[%s190 + $0x4] sm:$0x1] %vm1117, %v1074
        %1121 = vst.msk [vmem:[%s190 + $0x6] sm:$0x1] %vm1117, %v1076
        %1122 = vst.msk [vmem:[%s190 + $0x8] sm:$0x1] %vm1117, %v1078
        %1123 = vst.msk [vmem:[%s190 + $0xa] sm:$0x1] %vm1117, %v1080
        %1124 = vst.msk [vmem:[%s190 + $0xc] sm:$0x1] %vm1117, %v1082
        %1125 = vst.msk [vmem:[%s190 + $0xe] sm:$0x1] %vm1117, %v1084
        %1126 = vst.msk [vmem:[%s190 + $0x10] sm:$0x1] %vm1117, %v1086
        %1127 = vst.msk [vmem:[%s190 + $0x12] sm:$0x1] %vm1117, %v1088
        %1128 = vst.msk [vmem:[%s190 + $0x14] sm:$0x1] %vm1117, %v1090
        %1129 = vst.msk [vmem:[%s190 + $0x16] sm:$0x1] %vm1117, %v1092
        %1130 = vst.msk [vmem:[%s190 + $0x18] sm:$0x1] %vm1117, %v1094
        %1131 = vst.msk [vmem:[%s190 + $0x1a] sm:$0x1] %vm1117, %v1096
        %1132 = vst.msk [vmem:[%s190 + $0x1c] sm:$0x1] %vm1117, %v1098
        %1133 = vst.msk [vmem:[%s190 + $0x1e] sm:$0x1] %vm1117, %v1100
        %1134 = vrot.lane.b32.xlu0 %v412, 72
        %v1135 = vpop.permute.xlu0 %1134
        %1136 = vrot.lane.b32.xlu0 %v422, 72
        %v1137 = vpop.permute.xlu0 %1136
        %1138 = vrot.lane.b32.xlu0 %v432, 72
        %v1139 = vpop.permute.xlu0 %1138
        %1140 = vrot.lane.b32.xlu0 %v442, 72
        %v1141 = vpop.permute.xlu0 %1140
        %1142 = vrot.lane.b32.xlu0 %v452, 72
        %v1143 = vpop.permute.xlu0 %1142
        %1144 = vrot.lane.b32.xlu0 %v462, 72
        %v1145 = vpop.permute.xlu0 %1144
        %1146 = vrot.lane.b32.xlu0 %v472, 72
        %v1147 = vpop.permute.xlu0 %1146
        %1148 = vrot.lane.b32.xlu0 %v482, 72
        %v1149 = vpop.permute.xlu0 %1148
        %1150 = vrot.lane.b32.xlu0 %v492, 72
        %v1151 = vpop.permute.xlu0 %1150
        %1152 = vrot.lane.b32.xlu0 %v502, 72
        %v1153 = vpop.permute.xlu0 %1152
        %1154 = vrot.lane.b32.xlu0 %v512, 72
        %v1155 = vpop.permute.xlu0 %1154
        %1156 = vrot.lane.b32.xlu0 %v522, 72
        %v1157 = vpop.permute.xlu0 %1156
        %1158 = vrot.lane.b32.xlu0 %v532, 72
        %v1159 = vpop.permute.xlu0 %1158
        %1160 = vrot.lane.b32.xlu0 %v542, 72
        %v1161 = vpop.permute.xlu0 %1160
        %1162 = vrot.lane.b32.xlu0 %v552, 72
        %v1163 = vpop.permute.xlu0 %1162
        %1164 = vrot.lane.b32.xlu0 %v562, 72
        %v1165 = vpop.permute.xlu0 %1164
        %vm1182 = vcmask 648769
        %1183 = vst.msk [vmem:[%s190 - $0x1] sm:$0x2] %vm1182, %v1135
        %1184 = vst.msk [vmem:[%s190 + $0x1] sm:$0x2] %vm1182, %v1137
        %1185 = vst.msk [vmem:[%s190 + $0x3] sm:$0x2] %vm1182, %v1139
        %1186 = vst.msk [vmem:[%s190 + $0x5] sm:$0x2] %vm1182, %v1141
        %1187 = vst.msk [vmem:[%s190 + $0x7] sm:$0x2] %vm1182, %v1143
        %1188 = vst.msk [vmem:[%s190 + $0x9] sm:$0x2] %vm1182, %v1145
        %1189 = vst.msk [vmem:[%s190 + $0xb] sm:$0x2] %vm1182, %v1147
        %1190 = vst.msk [vmem:[%s190 + $0xd] sm:$0x2] %vm1182, %v1149
        %1191 = vst.msk [vmem:[%s190 + $0xf] sm:$0x2] %vm1182, %v1151
        %1192 = vst.msk [vmem:[%s190 + $0x11] sm:$0x2] %vm1182, %v1153
        %1193 = vst.msk [vmem:[%s190 + $0x13] sm:$0x2] %vm1182, %v1155
        %1194 = vst.msk [vmem:[%s190 + $0x15] sm:$0x2] %vm1182, %v1157
        %1195 = vst.msk [vmem:[%s190 + $0x17] sm:$0x2] %vm1182, %v1159
        %1196 = vst.msk [vmem:[%s190 + $0x19] sm:$0x2] %vm1182, %v1161
        %1197 = vst.msk [vmem:[%s190 + $0x1b] sm:$0x2] %vm1182, %v1163
        %1198 = vst.msk [vmem:[%s190 + $0x1d] sm:$0x2] %vm1182, %v1165
        %1199 = vrot.lane.b32.xlu0 %v412, 80
        %v1200 = vpop.permute.xlu0 %1199
        %1201 = vrot.lane.b32.xlu0 %v422, 80
        %v1202 = vpop.permute.xlu0 %1201
        %1203 = vrot.lane.b32.xlu0 %v432, 80
        %v1204 = vpop.permute.xlu0 %1203
        %1205 = vrot.lane.b32.xlu0 %v442, 80
        %v1206 = vpop.permute.xlu0 %1205
        %1207 = vrot.lane.b32.xlu0 %v452, 80
        %v1208 = vpop.permute.xlu0 %1207
        %1209 = vrot.lane.b32.xlu0 %v462, 80
        %v1210 = vpop.permute.xlu0 %1209
        %1211 = vrot.lane.b32.xlu0 %v472, 80
        %v1212 = vpop.permute.xlu0 %1211
        %1213 = vrot.lane.b32.xlu0 %v482, 80
        %v1214 = vpop.permute.xlu0 %1213
        %1215 = vrot.lane.b32.xlu0 %v492, 80
        %v1216 = vpop.permute.xlu0 %1215
        %1217 = vrot.lane.b32.xlu0 %v502, 80
        %v1218 = vpop.permute.xlu0 %1217
        %1219 = vrot.lane.b32.xlu0 %v512, 80
        %v1220 = vpop.permute.xlu0 %1219
        %1221 = vrot.lane.b32.xlu0 %v522, 80
        %v1222 = vpop.permute.xlu0 %1221
        %1223 = vrot.lane.b32.xlu0 %v532, 80
        %v1224 = vpop.permute.xlu0 %1223
        %1225 = vrot.lane.b32.xlu0 %v542, 80
        %v1226 = vpop.permute.xlu0 %1225
        %1227 = vrot.lane.b32.xlu0 %v552, 80
        %v1228 = vpop.permute.xlu0 %1227
        %1229 = vrot.lane.b32.xlu0 %v562, 80
        %v1230 = vpop.permute.xlu0 %1229
        %vm1247 = vcmask 715394
        %1248 = vst.msk [vmem:[%s190 - $0x2] sm:$0x4] %vm1247, %v1200
        %1249 = vst.msk [vmem:[%s190] sm:$0x4] %vm1247, %v1202
        %1250 = vst.msk [vmem:[%s190 + $0x2] sm:$0x4] %vm1247, %v1204
        %1251 = vst.msk [vmem:[%s190 + $0x4] sm:$0x4] %vm1247, %v1206
        %1252 = vst.msk [vmem:[%s190 + $0x6] sm:$0x4] %vm1247, %v1208
        %1253 = vst.msk [vmem:[%s190 + $0x8] sm:$0x4] %vm1247, %v1210
        %1254 = vst.msk [vmem:[%s190 + $0xa] sm:$0x4] %vm1247, %v1212
        %1255 = vst.msk [vmem:[%s190 + $0xc] sm:$0x4] %vm1247, %v1214
        %1256 = vst.msk [vmem:[%s190 + $0xe] sm:$0x4] %vm1247, %v1216
        %1257 = vst.msk [vmem:[%s190 + $0x10] sm:$0x4] %vm1247, %v1218
        %1258 = vst.msk [vmem:[%s190 + $0x12] sm:$0x4] %vm1247, %v1220
        %1259 = vst.msk [vmem:[%s190 + $0x14] sm:$0x4] %vm1247, %v1222
        %1260 = vst.msk [vmem:[%s190 + $0x16] sm:$0x4] %vm1247, %v1224
        %1261 = vst.msk [vmem:[%s190 + $0x18] sm:$0x4] %vm1247, %v1226
        %1262 = vst.msk [vmem:[%s190 + $0x1a] sm:$0x4] %vm1247, %v1228
        %1263 = vst.msk [vmem:[%s190 + $0x1c] sm:$0x4] %vm1247, %v1230
        %1264 = vrot.lane.b32.xlu0 %v412, 88
        %v1265 = vpop.permute.xlu0 %1264
        %1266 = vrot.lane.b32.xlu0 %v422, 88
        %v1267 = vpop.permute.xlu0 %1266
        %1268 = vrot.lane.b32.xlu0 %v432, 88
        %v1269 = vpop.permute.xlu0 %1268
        %1270 = vrot.lane.b32.xlu0 %v442, 88
        %v1271 = vpop.permute.xlu0 %1270
        %1272 = vrot.lane.b32.xlu0 %v452, 88
        %v1273 = vpop.permute.xlu0 %1272
        %1274 = vrot.lane.b32.xlu0 %v462, 88
        %v1275 = vpop.permute.xlu0 %1274
        %1276 = vrot.lane.b32.xlu0 %v472, 88
        %v1277 = vpop.permute.xlu0 %1276
        %1278 = vrot.lane.b32.xlu0 %v482, 88
        %v1279 = vpop.permute.xlu0 %1278
        %1280 = vrot.lane.b32.xlu0 %v492, 88
        %v1281 = vpop.permute.xlu0 %1280
        %1282 = vrot.lane.b32.xlu0 %v502, 88
        %v1283 = vpop.permute.xlu0 %1282
        %1284 = vrot.lane.b32.xlu0 %v512, 88
        %v1285 = vpop.permute.xlu0 %1284
        %1286 = vrot.lane.b32.xlu0 %v522, 88
        %v1287 = vpop.permute.xlu0 %1286
        %1288 = vrot.lane.b32.xlu0 %v532, 88
        %v1289 = vpop.permute.xlu0 %1288
        %1290 = vrot.lane.b32.xlu0 %v542, 88
        %v1291 = vpop.permute.xlu0 %1290
        %1292 = vrot.lane.b32.xlu0 %v552, 88
        %v1293 = vpop.permute.xlu0 %1292
        %1294 = vrot.lane.b32.xlu0 %v562, 88
        %v1295 = vpop.permute.xlu0 %1294
        %vm1312 = vcmask 782019
        %1313 = vst.msk [vmem:[%s190 - $0x3] sm:$0x8] %vm1312, %v1265
        %1314 = vst.msk [vmem:[%s190 - $0x1] sm:$0x8] %vm1312, %v1267
        %1315 = vst.msk [vmem:[%s190 + $0x1] sm:$0x8] %vm1312, %v1269
        %1316 = vst.msk [vmem:[%s190 + $0x3] sm:$0x8] %vm1312, %v1271
        %1317 = vst.msk [vmem:[%s190 + $0x5] sm:$0x8] %vm1312, %v1273
        %1318 = vst.msk [vmem:[%s190 + $0x7] sm:$0x8] %vm1312, %v1275
        %1319 = vst.msk [vmem:[%s190 + $0x9] sm:$0x8] %vm1312, %v1277
        %1320 = vst.msk [vmem:[%s190 + $0xb] sm:$0x8] %vm1312, %v1279
        %1321 = vst.msk [vmem:[%s190 + $0xd] sm:$0x8] %vm1312, %v1281
        %1322 = vst.msk [vmem:[%s190 + $0xf] sm:$0x8] %vm1312, %v1283
        %1323 = vst.msk [vmem:[%s190 + $0x11] sm:$0x8] %vm1312, %v1285
        %1324 = vst.msk [vmem:[%s190 + $0x13] sm:$0x8] %vm1312, %v1287
        %1325 = vst.msk [vmem:[%s190 + $0x15] sm:$0x8] %vm1312, %v1289
        %1326 = vst.msk [vmem:[%s190 + $0x17] sm:$0x8] %vm1312, %v1291
        %1327 = vst.msk [vmem:[%s190 + $0x19] sm:$0x8] %vm1312, %v1293
        %1328 = vst.msk [vmem:[%s190 + $0x1b] sm:$0x8] %vm1312, %v1295
        %1329 = vrot.lane.b32.xlu0 %v412, 96
        %v1330 = vpop.permute.xlu0 %1329
        %1331 = vrot.lane.b32.xlu0 %v422, 96
        %v1332 = vpop.permute.xlu0 %1331
        %1333 = vrot.lane.b32.xlu0 %v432, 96
        %v1334 = vpop.permute.xlu0 %1333
        %1335 = vrot.lane.b32.xlu0 %v442, 96
        %v1336 = vpop.permute.xlu0 %1335
        %1337 = vrot.lane.b32.xlu0 %v452, 96
        %v1338 = vpop.permute.xlu0 %1337
        %1339 = vrot.lane.b32.xlu0 %v462, 96
        %v1340 = vpop.permute.xlu0 %1339
        %1341 = vrot.lane.b32.xlu0 %v472, 96
        %v1342 = vpop.permute.xlu0 %1341
        %1343 = vrot.lane.b32.xlu0 %v482, 96
        %v1344 = vpop.permute.xlu0 %1343
        %1345 = vrot.lane.b32.xlu0 %v492, 96
        %v1346 = vpop.permute.xlu0 %1345
        %1347 = vrot.lane.b32.xlu0 %v502, 96
        %v1348 = vpop.permute.xlu0 %1347
        %1349 = vrot.lane.b32.xlu0 %v512, 96
        %v1350 = vpop.permute.xlu0 %1349
        %1351 = vrot.lane.b32.xlu0 %v522, 96
        %v1352 = vpop.permute.xlu0 %1351
        %1353 = vrot.lane.b32.xlu0 %v532, 96
        %v1354 = vpop.permute.xlu0 %1353
        %1355 = vrot.lane.b32.xlu0 %v542, 96
        %v1356 = vpop.permute.xlu0 %1355
        %1357 = vrot.lane.b32.xlu0 %v552, 96
        %v1358 = vpop.permute.xlu0 %1357
        %1359 = vrot.lane.b32.xlu0 %v562, 96
        %v1360 = vpop.permute.xlu0 %1359
        %vm1377 = vcmask 848644
        %1378 = vst.msk [vmem:[%s190 - $0x4] sm:$0x10] %vm1377, %v1330
        %1379 = vst.msk [vmem:[%s190 - $0x2] sm:$0x10] %vm1377, %v1332
        %1380 = vst.msk [vmem:[%s190] sm:$0x10] %vm1377, %v1334
        %1381 = vst.msk [vmem:[%s190 + $0x2] sm:$0x10] %vm1377, %v1336
        %1382 = vst.msk [vmem:[%s190 + $0x4] sm:$0x10] %vm1377, %v1338
        %1383 = vst.msk [vmem:[%s190 + $0x6] sm:$0x10] %vm1377, %v1340
        %1384 = vst.msk [vmem:[%s190 + $0x8] sm:$0x10] %vm1377, %v1342
        %1385 = vst.msk [vmem:[%s190 + $0xa] sm:$0x10] %vm1377, %v1344
        %1386 = vst.msk [vmem:[%s190 + $0xc] sm:$0x10] %vm1377, %v1346
        %1387 = vst.msk [vmem:[%s190 + $0xe] sm:$0x10] %vm1377, %v1348
        %1388 = vst.msk [vmem:[%s190 + $0x10] sm:$0x10] %vm1377, %v1350
        %1389 = vst.msk [vmem:[%s190 + $0x12] sm:$0x10] %vm1377, %v1352
        %1390 = vst.msk [vmem:[%s190 + $0x14] sm:$0x10] %vm1377, %v1354
        %1391 = vst.msk [vmem:[%s190 + $0x16] sm:$0x10] %vm1377, %v1356
        %1392 = vst.msk [vmem:[%s190 + $0x18] sm:$0x10] %vm1377, %v1358
        %1393 = vst.msk [vmem:[%s190 + $0x1a] sm:$0x10] %vm1377, %v1360
        %1394 = vrot.lane.b32.xlu0 %v412, 104
        %v1395 = vpop.permute.xlu0 %1394
        %1396 = vrot.lane.b32.xlu0 %v422, 104
        %v1397 = vpop.permute.xlu0 %1396
        %1398 = vrot.lane.b32.xlu0 %v432, 104
        %v1399 = vpop.permute.xlu0 %1398
        %1400 = vrot.lane.b32.xlu0 %v442, 104
        %v1401 = vpop.permute.xlu0 %1400
        %1402 = vrot.lane.b32.xlu0 %v452, 104
        %v1403 = vpop.permute.xlu0 %1402
        %1404 = vrot.lane.b32.xlu0 %v462, 104
        %v1405 = vpop.permute.xlu0 %1404
        %1406 = vrot.lane.b32.xlu0 %v472, 104
        %v1407 = vpop.permute.xlu0 %1406
        %1408 = vrot.lane.b32.xlu0 %v482, 104
        %v1409 = vpop.permute.xlu0 %1408
        %1410 = vrot.lane.b32.xlu0 %v492, 104
        %v1411 = vpop.permute.xlu0 %1410
        %1412 = vrot.lane.b32.xlu0 %v502, 104
        %v1413 = vpop.permute.xlu0 %1412
        %1414 = vrot.lane.b32.xlu0 %v512, 104
        %v1415 = vpop.permute.xlu0 %1414
        %1416 = vrot.lane.b32.xlu0 %v522, 104
        %v1417 = vpop.permute.xlu0 %1416
        %1418 = vrot.lane.b32.xlu0 %v532, 104
        %v1419 = vpop.permute.xlu0 %1418
        %1420 = vrot.lane.b32.xlu0 %v542, 104
        %v1421 = vpop.permute.xlu0 %1420
        %1422 = vrot.lane.b32.xlu0 %v552, 104
        %v1423 = vpop.permute.xlu0 %1422
        %1424 = vrot.lane.b32.xlu0 %v562, 104
        %v1425 = vpop.permute.xlu0 %1424
        %vm1442 = vcmask 915269
        %1443 = vst.msk [vmem:[%s190 - $0x5] sm:$0x20] %vm1442, %v1395
        %1444 = vst.msk [vmem:[%s190 - $0x3] sm:$0x20] %vm1442, %v1397
        %1445 = vst.msk [vmem:[%s190 - $0x1] sm:$0x20] %vm1442, %v1399
        %1446 = vst.msk [vmem:[%s190 + $0x1] sm:$0x20] %vm1442, %v1401
        %1447 = vst.msk [vmem:[%s190 + $0x3] sm:$0x20] %vm1442, %v1403
        %1448 = vst.msk [vmem:[%s190 + $0x5] sm:$0x20] %vm1442, %v1405
        %1449 = vst.msk [vmem:[%s190 + $0x7] sm:$0x20] %vm1442, %v1407
        %1450 = vst.msk [vmem:[%s190 + $0x9] sm:$0x20] %vm1442, %v1409
        %1451 = vst.msk [vmem:[%s190 + $0xb] sm:$0x20] %vm1442, %v1411
        %1452 = vst.msk [vmem:[%s190 + $0xd] sm:$0x20] %vm1442, %v1413
        %1453 = vst.msk [vmem:[%s190 + $0xf] sm:$0x20] %vm1442, %v1415
        %1454 = vst.msk [vmem:[%s190 + $0x11] sm:$0x20] %vm1442, %v1417
        %1455 = vst.msk [vmem:[%s190 + $0x13] sm:$0x20] %vm1442, %v1419
        %1456 = vst.msk [vmem:[%s190 + $0x15] sm:$0x20] %vm1442, %v1421
        %1457 = vst.msk [vmem:[%s190 + $0x17] sm:$0x20] %vm1442, %v1423
        %1458 = vst.msk [vmem:[%s190 + $0x19] sm:$0x20] %vm1442, %v1425
        %1459 = vrot.lane.b32.xlu0 %v412, 112
        %v1460 = vpop.permute.xlu0 %1459
        %1461 = vrot.lane.b32.xlu0 %v422, 112
        %v1462 = vpop.permute.xlu0 %1461
        %1463 = vrot.lane.b32.xlu0 %v432, 112
        %v1464 = vpop.permute.xlu0 %1463
        %1465 = vrot.lane.b32.xlu0 %v442, 112
        %v1466 = vpop.permute.xlu0 %1465
        %1467 = vrot.lane.b32.xlu0 %v452, 112
        %v1468 = vpop.permute.xlu0 %1467
        %1469 = vrot.lane.b32.xlu0 %v462, 112
        %v1470 = vpop.permute.xlu0 %1469
        %1471 = vrot.lane.b32.xlu0 %v472, 112
        %v1472 = vpop.permute.xlu0 %1471
        %1473 = vrot.lane.b32.xlu0 %v482, 112
        %v1474 = vpop.permute.xlu0 %1473
        %1475 = vrot.lane.b32.xlu0 %v492, 112
        %v1476 = vpop.permute.xlu0 %1475
        %1477 = vrot.lane.b32.xlu0 %v502, 112
        %v1478 = vpop.permute.xlu0 %1477
        %1479 = vrot.lane.b32.xlu0 %v512, 112
        %v1480 = vpop.permute.xlu0 %1479
        %1481 = vrot.lane.b32.xlu0 %v522, 112
        %v1482 = vpop.permute.xlu0 %1481
        %1483 = vrot.lane.b32.xlu0 %v532, 112
        %v1484 = vpop.permute.xlu0 %1483
        %1485 = vrot.lane.b32.xlu0 %v542, 112
        %v1486 = vpop.permute.xlu0 %1485
        %1487 = vrot.lane.b32.xlu0 %v552, 112
        %v1488 = vpop.permute.xlu0 %1487
        %1489 = vrot.lane.b32.xlu0 %v562, 112
        %v1490 = vpop.permute.xlu0 %1489
        %vm1507 = vcmask 981894
        %1508 = vst.msk [vmem:[%s190 - $0x6] sm:$0x40] %vm1507, %v1460
        %1509 = vst.msk [vmem:[%s190 - $0x4] sm:$0x40] %vm1507, %v1462
        %1510 = vst.msk [vmem:[%s190 - $0x2] sm:$0x40] %vm1507, %v1464
        %1511 = vst.msk [vmem:[%s190] sm:$0x40] %vm1507, %v1466
        %1512 = vst.msk [vmem:[%s190 + $0x2] sm:$0x40] %vm1507, %v1468
        %1513 = vst.msk [vmem:[%s190 + $0x4] sm:$0x40] %vm1507, %v1470
        %1514 = vst.msk [vmem:[%s190 + $0x6] sm:$0x40] %vm1507, %v1472
        %1515 = vst.msk [vmem:[%s190 + $0x8] sm:$0x40] %vm1507, %v1474
        %1516 = vst.msk [vmem:[%s190 + $0xa] sm:$0x40] %vm1507, %v1476
        %1517 = vst.msk [vmem:[%s190 + $0xc] sm:$0x40] %vm1507, %v1478
        %1518 = vst.msk [vmem:[%s190 + $0xe] sm:$0x40] %vm1507, %v1480
        %1519 = vst.msk [vmem:[%s190 + $0x10] sm:$0x40] %vm1507, %v1482
        %1520 = vst.msk [vmem:[%s190 + $0x12] sm:$0x40] %vm1507, %v1484
        %1521 = vst.msk [vmem:[%s190 + $0x14] sm:$0x40] %vm1507, %v1486
        %1522 = vst.msk [vmem:[%s190 + $0x16] sm:$0x40] %vm1507, %v1488
        %1523 = vst.msk [vmem:[%s190 + $0x18] sm:$0x40] %vm1507, %v1490
        %1524 = vrot.lane.b32.xlu0 %v412, 120
        %v1525 = vpop.permute.xlu0 %1524
        %1526 = vrot.lane.b32.xlu0 %v422, 120
        %v1527 = vpop.permute.xlu0 %1526
        %1528 = vrot.lane.b32.xlu0 %v432, 120
        %v1529 = vpop.permute.xlu0 %1528
        %1530 = vrot.lane.b32.xlu0 %v442, 120
        %v1531 = vpop.permute.xlu0 %1530
        %1532 = vrot.lane.b32.xlu0 %v452, 120
        %v1533 = vpop.permute.xlu0 %1532
        %1534 = vrot.lane.b32.xlu0 %v462, 120
        %v1535 = vpop.permute.xlu0 %1534
        %1536 = vrot.lane.b32.xlu0 %v472, 120
        %v1537 = vpop.permute.xlu0 %1536
        %1538 = vrot.lane.b32.xlu0 %v482, 120
        %v1539 = vpop.permute.xlu0 %1538
        %1540 = vrot.lane.b32.xlu0 %v492, 120
        %v1541 = vpop.permute.xlu0 %1540
        %1542 = vrot.lane.b32.xlu0 %v502, 120
        %v1543 = vpop.permute.xlu0 %1542
        %1544 = vrot.lane.b32.xlu0 %v512, 120
        %v1545 = vpop.permute.xlu0 %1544
        %1546 = vrot.lane.b32.xlu0 %v522, 120
        %v1547 = vpop.permute.xlu0 %1546
        %1548 = vrot.lane.b32.xlu0 %v532, 120
        %v1549 = vpop.permute.xlu0 %1548
        %1550 = vrot.lane.b32.xlu0 %v542, 120
        %v1551 = vpop.permute.xlu0 %1550
        %1552 = vrot.lane.b32.xlu0 %v552, 120
        %v1553 = vpop.permute.xlu0 %1552
        %1554 = vrot.lane.b32.xlu0 %v562, 120
        %v1555 = vpop.permute.xlu0 %1554
        %vm1572 = vcmask 1048519
        %1573 = vst.msk [vmem:[%s190 - $0x7] sm:$0x80] %vm1572, %v1525
        %1574 = vst.msk [vmem:[%s190 - $0x5] sm:$0x80] %vm1572, %v1527
        %1575 = vst.msk [vmem:[%s190 - $0x3] sm:$0x80] %vm1572, %v1529
        %1576 = vst.msk [vmem:[%s190 - $0x1] sm:$0x80] %vm1572, %v1531
        %1577 = vst.msk [vmem:[%s190 + $0x1] sm:$0x80] %vm1572, %v1533
        %1578 = vst.msk [vmem:[%s190 + $0x3] sm:$0x80] %vm1572, %v1535
        %1579 = vst.msk [vmem:[%s190 + $0x5] sm:$0x80] %vm1572, %v1537
        %1580 = vst.msk [vmem:[%s190 + $0x7] sm:$0x80] %vm1572, %v1539
        %1581 = vst.msk [vmem:[%s190 + $0x9] sm:$0x80] %vm1572, %v1541
        %1582 = vst.msk [vmem:[%s190 + $0xb] sm:$0x80] %vm1572, %v1543
        %1583 = vst.msk [vmem:[%s190 + $0xd] sm:$0x80] %vm1572, %v1545
        %1584 = vst.msk [vmem:[%s190 + $0xf] sm:$0x80] %vm1572, %v1547
        %1585 = vst.msk [vmem:[%s190 + $0x11] sm:$0x80] %vm1572, %v1549
        %1586 = vst.msk [vmem:[%s190 + $0x13] sm:$0x80] %vm1572, %v1551
        %1587 = vst.msk [vmem:[%s190 + $0x15] sm:$0x80] %vm1572, %v1553
        %1588 = vst.msk [vmem:[%s190 + $0x17] sm:$0x80] %vm1572, %v1555
        %1589 = vrot.lane.b32.xlu0 %v407, 120
        %v1590 = vpop.permute.xlu0 %1589
        %1591 = vrot.lane.b32.xlu0 %v417, 120
        %v1592 = vpop.permute.xlu0 %1591
        %1593 = vrot.lane.b32.xlu0 %v427, 120
        %v1594 = vpop.permute.xlu0 %1593
        %1595 = vrot.lane.b32.xlu0 %v437, 120
        %v1596 = vpop.permute.xlu0 %1595
        %1597 = vrot.lane.b32.xlu0 %v447, 120
        %v1598 = vpop.permute.xlu0 %1597
        %1599 = vrot.lane.b32.xlu0 %v457, 120
        %v1600 = vpop.permute.xlu0 %1599
        %1601 = vrot.lane.b32.xlu0 %v467, 120
        %v1602 = vpop.permute.xlu0 %1601
        %1603 = vrot.lane.b32.xlu0 %v477, 120
        %v1604 = vpop.permute.xlu0 %1603
        %1605 = vrot.lane.b32.xlu0 %v487, 120
        %v1606 = vpop.permute.xlu0 %1605
        %1607 = vrot.lane.b32.xlu0 %v497, 120
        %v1608 = vpop.permute.xlu0 %1607
        %1609 = vrot.lane.b32.xlu0 %v507, 120
        %v1610 = vpop.permute.xlu0 %1609
        %1611 = vrot.lane.b32.xlu0 %v517, 120
        %v1612 = vpop.permute.xlu0 %1611
        %1613 = vrot.lane.b32.xlu0 %v527, 120
        %v1614 = vpop.permute.xlu0 %1613
        %1615 = vrot.lane.b32.xlu0 %v537, 120
        %v1616 = vpop.permute.xlu0 %1615
        %1617 = vrot.lane.b32.xlu0 %v547, 120
        %v1618 = vpop.permute.xlu0 %1617
        %1619 = vrot.lane.b32.xlu0 %v557, 120
        %v1620 = vpop.permute.xlu0 %1619
        %1637 = vst.msk [vmem:[%s190 + $0x1] sm:$0x1] %vm565, %v1590
        %1638 = vst.msk [vmem:[%s190 + $0x3] sm:$0x1] %vm565, %v1592
        %1639 = vst.msk [vmem:[%s190 + $0x5] sm:$0x1] %vm565, %v1594
        %1640 = vst.msk [vmem:[%s190 + $0x7] sm:$0x1] %vm565, %v1596
        %1641 = vst.msk [vmem:[%s190 + $0x9] sm:$0x1] %vm565, %v1598
        %1642 = vst.msk [vmem:[%s190 + $0xb] sm:$0x1] %vm565, %v1600
        %1643 = vst.msk [vmem:[%s190 + $0xd] sm:$0x1] %vm565, %v1602
        %1644 = vst.msk [vmem:[%s190 + $0xf] sm:$0x1] %vm565, %v1604
        %1645 = vst.msk [vmem:[%s190 + $0x11] sm:$0x1] %vm565, %v1606
        %1646 = vst.msk [vmem:[%s190 + $0x13] sm:$0x1] %vm565, %v1608
        %1647 = vst.msk [vmem:[%s190 + $0x15] sm:$0x1] %vm565, %v1610
        %1648 = vst.msk [vmem:[%s190 + $0x17] sm:$0x1] %vm565, %v1612
        %1649 = vst.msk [vmem:[%s190 + $0x19] sm:$0x1] %vm565, %v1614
        %1650 = vst.msk [vmem:[%s190 + $0x1b] sm:$0x1] %vm565, %v1616
        %1651 = vst.msk [vmem:[%s190 + $0x1d] sm:$0x1] %vm565, %v1618
        %1652 = vst.msk [vmem:[%s190 + $0x1f] sm:$0x1] %vm565, %v1620
        %1653 = vst.msk [vmem:[%s190] sm:$0x2] %vm646, %v407
        %1654 = vst.msk [vmem:[%s190 + $0x2] sm:$0x2] %vm646, %v417
        %1655 = vst.msk [vmem:[%s190 + $0x4] sm:$0x2] %vm646, %v427
        %1656 = vst.msk [vmem:[%s190 + $0x6] sm:$0x2] %vm646, %v437
        %1657 = vst.msk [vmem:[%s190 + $0x8] sm:$0x2] %vm646, %v447
        %1658 = vst.msk [vmem:[%s190 + $0xa] sm:$0x2] %vm646, %v457
        %1659 = vst.msk [vmem:[%s190 + $0xc] sm:$0x2] %vm646, %v467
        %1660 = vst.msk [vmem:[%s190 + $0xe] sm:$0x2] %vm646, %v477
        %1661 = vst.msk [vmem:[%s190 + $0x10] sm:$0x2] %vm646, %v487
        %1662 = vst.msk [vmem:[%s190 + $0x12] sm:$0x2] %vm646, %v497
        %1663 = vst.msk [vmem:[%s190 + $0x14] sm:$0x2] %vm646, %v507
        %1664 = vst.msk [vmem:[%s190 + $0x16] sm:$0x2] %vm646, %v517
        %1665 = vst.msk [vmem:[%s190 + $0x18] sm:$0x2] %vm646, %v527
        %1666 = vst.msk [vmem:[%s190 + $0x1a] sm:$0x2] %vm646, %v537
        %1667 = vst.msk [vmem:[%s190 + $0x1c] sm:$0x2] %vm646, %v547
        %1668 = vst.msk [vmem:[%s190 + $0x1e] sm:$0x2] %vm646, %v557
        %1669 = vst.msk [vmem:[%s190 - $0x1] sm:$0x4] %vm711, %v599
        %1670 = vst.msk [vmem:[%s190 + $0x1] sm:$0x4] %vm711, %v601
        %1671 = vst.msk [vmem:[%s190 + $0x3] sm:$0x4] %vm711, %v603
        %1672 = vst.msk [vmem:[%s190 + $0x5] sm:$0x4] %vm711, %v605
        %1673 = vst.msk [vmem:[%s190 + $0x7] sm:$0x4] %vm711, %v607
        %1674 = vst.msk [vmem:[%s190 + $0x9] sm:$0x4] %vm711, %v609
        %1675 = vst.msk [vmem:[%s190 + $0xb] sm:$0x4] %vm711, %v611
        %1676 = vst.msk [vmem:[%s190 + $0xd] sm:$0x4] %vm711, %v613
        %1677 = vst.msk [vmem:[%s190 + $0xf] sm:$0x4] %vm711, %v615
        %1678 = vst.msk [vmem:[%s190 + $0x11] sm:$0x4] %vm711, %v617
        %1679 = vst.msk [vmem:[%s190 + $0x13] sm:$0x4] %vm711, %v619
        %1680 = vst.msk [vmem:[%s190 + $0x15] sm:$0x4] %vm711, %v621
        %1681 = vst.msk [vmem:[%s190 + $0x17] sm:$0x4] %vm711, %v623
        %1682 = vst.msk [vmem:[%s190 + $0x19] sm:$0x4] %vm711, %v625
        %1683 = vst.msk [vmem:[%s190 + $0x1b] sm:$0x4] %vm711, %v627
        %1684 = vst.msk [vmem:[%s190 + $0x1d] sm:$0x4] %vm711, %v629
        %1685 = vst.msk [vmem:[%s190 - $0x2] sm:$0x8] %vm776, %v664
        %1686 = vst.msk [vmem:[%s190] sm:$0x8] %vm776, %v666
        %1687 = vst.msk [vmem:[%s190 + $0x2] sm:$0x8] %vm776, %v668
        %1688 = vst.msk [vmem:[%s190 + $0x4] sm:$0x8] %vm776, %v670
        %1689 = vst.msk [vmem:[%s190 + $0x6] sm:$0x8] %vm776, %v672
        %1690 = vst.msk [vmem:[%s190 + $0x8] sm:$0x8] %vm776, %v674
        %1691 = vst.msk [vmem:[%s190 + $0xa] sm:$0x8] %vm776, %v676
        %1692 = vst.msk [vmem:[%s190 + $0xc] sm:$0x8] %vm776, %v678
        %1693 = vst.msk [vmem:[%s190 + $0xe] sm:$0x8] %vm776, %v680
        %1694 = vst.msk [vmem:[%s190 + $0x10] sm:$0x8] %vm776, %v682
        %1695 = vst.msk [vmem:[%s190 + $0x12] sm:$0x8] %vm776, %v684
        %1696 = vst.msk [vmem:[%s190 + $0x14] sm:$0x8] %vm776, %v686
        %1697 = vst.msk [vmem:[%s190 + $0x16] sm:$0x8] %vm776, %v688
        %1698 = vst.msk [vmem:[%s190 + $0x18] sm:$0x8] %vm776, %v690
        %1699 = vst.msk [vmem:[%s190 + $0x1a] sm:$0x8] %vm776, %v692
        %1700 = vst.msk [vmem:[%s190 + $0x1c] sm:$0x8] %vm776, %v694
        %1701 = vst.msk [vmem:[%s190 - $0x3] sm:$0x10] %vm841, %v729
        %1702 = vst.msk [vmem:[%s190 - $0x1] sm:$0x10] %vm841, %v731
        %1703 = vst.msk [vmem:[%s190 + $0x1] sm:$0x10] %vm841, %v733
        %1704 = vst.msk [vmem:[%s190 + $0x3] sm:$0x10] %vm841, %v735
        %1705 = vst.msk [vmem:[%s190 + $0x5] sm:$0x10] %vm841, %v737
        %1706 = vst.msk [vmem:[%s190 + $0x7] sm:$0x10] %vm841, %v739
        %1707 = vst.msk [vmem:[%s190 + $0x9] sm:$0x10] %vm841, %v741
        %1708 = vst.msk [vmem:[%s190 + $0xb] sm:$0x10] %vm841, %v743
        %1709 = vst.msk [vmem:[%s190 + $0xd] sm:$0x10] %vm841, %v745
        %1710 = vst.msk [vmem:[%s190 + $0xf] sm:$0x10] %vm841, %v747
        %1711 = vst.msk [vmem:[%s190 + $0x11] sm:$0x10] %vm841, %v749
        %1712 = vst.msk [vmem:[%s190 + $0x13] sm:$0x10] %vm841, %v751
        %1713 = vst.msk [vmem:[%s190 + $0x15] sm:$0x10] %vm841, %v753
        %1714 = vst.msk [vmem:[%s190 + $0x17] sm:$0x10] %vm841, %v755
        %1715 = vst.msk [vmem:[%s190 + $0x19] sm:$0x10] %vm841, %v757
        %1716 = vst.msk [vmem:[%s190 + $0x1b] sm:$0x10] %vm841, %v759
        %1717 = vst.msk [vmem:[%s190 - $0x4] sm:$0x20] %vm906, %v794
        %1718 = vst.msk [vmem:[%s190 - $0x2] sm:$0x20] %vm906, %v796
        %1719 = vst.msk [vmem:[%s190] sm:$0x20] %vm906, %v798
        %1720 = vst.msk [vmem:[%s190 + $0x2] sm:$0x20] %vm906, %v800
        %1721 = vst.msk [vmem:[%s190 + $0x4] sm:$0x20] %vm906, %v802
        %1722 = vst.msk [vmem:[%s190 + $0x6] sm:$0x20] %vm906, %v804
        %1723 = vst.msk [vmem:[%s190 + $0x8] sm:$0x20] %vm906, %v806
        %1724 = vst.msk [vmem:[%s190 + $0xa] sm:$0x20] %vm906, %v808
        %1725 = vst.msk [vmem:[%s190 + $0xc] sm:$0x20] %vm906, %v810
        %1726 = vst.msk [vmem:[%s190 + $0xe] sm:$0x20] %vm906, %v812
        %1727 = vst.msk [vmem:[%s190 + $0x10] sm:$0x20] %vm906, %v814
        %1728 = vst.msk [vmem:[%s190 + $0x12] sm:$0x20] %vm906, %v816
        %1729 = vst.msk [vmem:[%s190 + $0x14] sm:$0x20] %vm906, %v818
        %1730 = vst.msk [vmem:[%s190 + $0x16] sm:$0x20] %vm906, %v820
        %1731 = vst.msk [vmem:[%s190 + $0x18] sm:$0x20] %vm906, %v822
        %1732 = vst.msk [vmem:[%s190 + $0x1a] sm:$0x20] %vm906, %v824
        %1733 = vst.msk [vmem:[%s190 - $0x5] sm:$0x40] %vm971, %v859
        %1734 = vst.msk [vmem:[%s190 - $0x3] sm:$0x40] %vm971, %v861
        %1735 = vst.msk [vmem:[%s190 - $0x1] sm:$0x40] %vm971, %v863
        %1736 = vst.msk [vmem:[%s190 + $0x1] sm:$0x40] %vm971, %v865
        %1737 = vst.msk [vmem:[%s190 + $0x3] sm:$0x40] %vm971, %v867
        %1738 = vst.msk [vmem:[%s190 + $0x5] sm:$0x40] %vm971, %v869
        %1739 = vst.msk [vmem:[%s190 + $0x7] sm:$0x40] %vm971, %v871
        %1740 = vst.msk [vmem:[%s190 + $0x9] sm:$0x40] %vm971, %v873
        %1741 = vst.msk [vmem:[%s190 + $0xb] sm:$0x40] %vm971, %v875
        %1742 = vst.msk [vmem:[%s190 + $0xd] sm:$0x40] %vm971, %v877
        %1743 = vst.msk [vmem:[%s190 + $0xf] sm:$0x40] %vm971, %v879
        %1744 = vst.msk [vmem:[%s190 + $0x11] sm:$0x40] %vm971, %v881
        %1745 = vst.msk [vmem:[%s190 + $0x13] sm:$0x40] %vm971, %v883
        %1746 = vst.msk [vmem:[%s190 + $0x15] sm:$0x40] %vm971, %v885
        %1747 = vst.msk [vmem:[%s190 + $0x17] sm:$0x40] %vm971, %v887
        %1748 = vst.msk [vmem:[%s190 + $0x19] sm:$0x40] %vm971, %v889
        %1749 = vst.msk [vmem:[%s190 - $0x6] sm:$0x80] %vm1036, %v924
        %1750 = vst.msk [vmem:[%s190 - $0x4] sm:$0x80] %vm1036, %v926
        %1751 = vst.msk [vmem:[%s190 - $0x2] sm:$0x80] %vm1036, %v928
        %1752 = vst.msk [vmem:[%s190] sm:$0x80] %vm1036, %v930
        %1753 = vst.msk [vmem:[%s190 + $0x2] sm:$0x80] %vm1036, %v932
        %1754 = vst.msk [vmem:[%s190 + $0x4] sm:$0x80] %vm1036, %v934
        %1755 = vst.msk [vmem:[%s190 + $0x6] sm:$0x80] %vm1036, %v936
        %1756 = vst.msk [vmem:[%s190 + $0x8] sm:$0x80] %vm1036, %v938
        %1757 = vst.msk [vmem:[%s190 + $0xa] sm:$0x80] %vm1036, %v940
        %1758 = vst.msk [vmem:[%s190 + $0xc] sm:$0x80] %vm1036, %v942
        %1759 = vst.msk [vmem:[%s190 + $0xe] sm:$0x80] %vm1036, %v944
        %1760 = vst.msk [vmem:[%s190 + $0x10] sm:$0x80] %vm1036, %v946
        %1761 = vst.msk [vmem:[%s190 + $0x12] sm:$0x80] %vm1036, %v948
        %1762 = vst.msk [vmem:[%s190 + $0x14] sm:$0x80] %vm1036, %v950
        %1763 = vst.msk [vmem:[%s190 + $0x16] sm:$0x80] %vm1036, %v952
        %1764 = vst.msk [vmem:[%s190 + $0x18] sm:$0x80] %vm1036, %v954
        %1765 = vrot.lane.b32.xlu0 %v412, 56
        %v1766 = vpop.permute.xlu0 %1765
        %1767 = vrot.lane.b32.xlu0 %v422, 56
        %v1768 = vpop.permute.xlu0 %1767
        %1769 = vrot.lane.b32.xlu0 %v432, 56
        %v1770 = vpop.permute.xlu0 %1769
        %1771 = vrot.lane.b32.xlu0 %v442, 56
        %v1772 = vpop.permute.xlu0 %1771
        %1773 = vrot.lane.b32.xlu0 %v452, 56
        %v1774 = vpop.permute.xlu0 %1773
        %1775 = vrot.lane.b32.xlu0 %v462, 56
        %v1776 = vpop.permute.xlu0 %1775
        %1777 = vrot.lane.b32.xlu0 %v472, 56
        %v1778 = vpop.permute.xlu0 %1777
        %1779 = vrot.lane.b32.xlu0 %v482, 56
        %v1780 = vpop.permute.xlu0 %1779
        %1781 = vrot.lane.b32.xlu0 %v492, 56
        %v1782 = vpop.permute.xlu0 %1781
        %1783 = vrot.lane.b32.xlu0 %v502, 56
        %v1784 = vpop.permute.xlu0 %1783
        %1785 = vrot.lane.b32.xlu0 %v512, 56
        %v1786 = vpop.permute.xlu0 %1785
        %1787 = vrot.lane.b32.xlu0 %v522, 56
        %v1788 = vpop.permute.xlu0 %1787
        %1789 = vrot.lane.b32.xlu0 %v532, 56
        %v1790 = vpop.permute.xlu0 %1789
        %1791 = vrot.lane.b32.xlu0 %v542, 56
        %v1792 = vpop.permute.xlu0 %1791
        %1793 = vrot.lane.b32.xlu0 %v552, 56
        %v1794 = vpop.permute.xlu0 %1793
        %1795 = vrot.lane.b32.xlu0 %v562, 56
        %v1796 = vpop.permute.xlu0 %1795
        %1813 = vst.msk [vmem:[%s190 + $0x1] sm:$0x1] %vm1117, %v1766
        %1814 = vst.msk [vmem:[%s190 + $0x3] sm:$0x1] %vm1117, %v1768
        %1815 = vst.msk [vmem:[%s190 + $0x5] sm:$0x1] %vm1117, %v1770
        %1816 = vst.msk [vmem:[%s190 + $0x7] sm:$0x1] %vm1117, %v1772
        %1817 = vst.msk [vmem:[%s190 + $0x9] sm:$0x1] %vm1117, %v1774
        %1818 = vst.msk [vmem:[%s190 + $0xb] sm:$0x1] %vm1117, %v1776
        %1819 = vst.msk [vmem:[%s190 + $0xd] sm:$0x1] %vm1117, %v1778
        %1820 = vst.msk [vmem:[%s190 + $0xf] sm:$0x1] %vm1117, %v1780
        %1821 = vst.msk [vmem:[%s190 + $0x11] sm:$0x1] %vm1117, %v1782
        %1822 = vst.msk [vmem:[%s190 + $0x13] sm:$0x1] %vm1117, %v1784
        %1823 = vst.msk [vmem:[%s190 + $0x15] sm:$0x1] %vm1117, %v1786
        %1824 = vst.msk [vmem:[%s190 + $0x17] sm:$0x1] %vm1117, %v1788
        %1825 = vst.msk [vmem:[%s190 + $0x19] sm:$0x1] %vm1117, %v1790
        %1826 = vst.msk [vmem:[%s190 + $0x1b] sm:$0x1] %vm1117, %v1792
        %1827 = vst.msk [vmem:[%s190 + $0x1d] sm:$0x1] %vm1117, %v1794
        %1828 = vst.msk [vmem:[%s190 + $0x1f] sm:$0x1] %vm1117, %v1796
        %1829 = vst.msk [vmem:[%s190] sm:$0x2] %vm1182, %v1070
        %1830 = vst.msk [vmem:[%s190 + $0x2] sm:$0x2] %vm1182, %v1072
        %1831 = vst.msk [vmem:[%s190 + $0x4] sm:$0x2] %vm1182, %v1074
        %1832 = vst.msk [vmem:[%s190 + $0x6] sm:$0x2] %vm1182, %v1076
        %1833 = vst.msk [vmem:[%s190 + $0x8] sm:$0x2] %vm1182, %v1078
        %1834 = vst.msk [vmem:[%s190 + $0xa] sm:$0x2] %vm1182, %v1080
        %1835 = vst.msk [vmem:[%s190 + $0xc] sm:$0x2] %vm1182, %v1082
        %1836 = vst.msk [vmem:[%s190 + $0xe] sm:$0x2] %vm1182, %v1084
        %1837 = vst.msk [vmem:[%s190 + $0x10] sm:$0x2] %vm1182, %v1086
        %1838 = vst.msk [vmem:[%s190 + $0x12] sm:$0x2] %vm1182, %v1088
        %1839 = vst.msk [vmem:[%s190 + $0x14] sm:$0x2] %vm1182, %v1090
        %1840 = vst.msk [vmem:[%s190 + $0x16] sm:$0x2] %vm1182, %v1092
        %1841 = vst.msk [vmem:[%s190 + $0x18] sm:$0x2] %vm1182, %v1094
        %1842 = vst.msk [vmem:[%s190 + $0x1a] sm:$0x2] %vm1182, %v1096
        %1843 = vst.msk [vmem:[%s190 + $0x1c] sm:$0x2] %vm1182, %v1098
        %1844 = vst.msk [vmem:[%s190 + $0x1e] sm:$0x2] %vm1182, %v1100
        %1845 = vst.msk [vmem:[%s190 - $0x1] sm:$0x4] %vm1247, %v1135
        %1846 = vst.msk [vmem:[%s190 + $0x1] sm:$0x4] %vm1247, %v1137
        %1847 = vst.msk [vmem:[%s190 + $0x3] sm:$0x4] %vm1247, %v1139
        %1848 = vst.msk [vmem:[%s190 + $0x5] sm:$0x4] %vm1247, %v1141
        %1849 = vst.msk [vmem:[%s190 + $0x7] sm:$0x4] %vm1247, %v1143
        %1850 = vst.msk [vmem:[%s190 + $0x9] sm:$0x4] %vm1247, %v1145
        %1851 = vst.msk [vmem:[%s190 + $0xb] sm:$0x4] %vm1247, %v1147
        %1852 = vst.msk [vmem:[%s190 + $0xd] sm:$0x4] %vm1247, %v1149
        %1853 = vst.msk [vmem:[%s190 + $0xf] sm:$0x4] %vm1247, %v1151
        %1854 = vst.msk [vmem:[%s190 + $0x11] sm:$0x4] %vm1247, %v1153
        %1855 = vst.msk [vmem:[%s190 + $0x13] sm:$0x4] %vm1247, %v1155
        %1856 = vst.msk [vmem:[%s190 + $0x15] sm:$0x4] %vm1247, %v1157
        %1857 = vst.msk [vmem:[%s190 + $0x17] sm:$0x4] %vm1247, %v1159
        %1858 = vst.msk [vmem:[%s190 + $0x19] sm:$0x4] %vm1247, %v1161
        %1859 = vst.msk [vmem:[%s190 + $0x1b] sm:$0x4] %vm1247, %v1163
        %1860 = vst.msk [vmem:[%s190 + $0x1d] sm:$0x4] %vm1247, %v1165
        %1861 = vst.msk [vmem:[%s190 - $0x2] sm:$0x8] %vm1312, %v1200
        %1862 = vst.msk [vmem:[%s190] sm:$0x8] %vm1312, %v1202
        %1863 = vst.msk [vmem:[%s190 + $0x2] sm:$0x8] %vm1312, %v1204
        %1864 = vst.msk [vmem:[%s190 + $0x4] sm:$0x8] %vm1312, %v1206
        %1865 = vst.msk [vmem:[%s190 + $0x6] sm:$0x8] %vm1312, %v1208
        %1866 = vst.msk [vmem:[%s190 + $0x8] sm:$0x8] %vm1312, %v1210
        %1867 = vst.msk [vmem:[%s190 + $0xa] sm:$0x8] %vm1312, %v1212
        %1868 = vst.msk [vmem:[%s190 + $0xc] sm:$0x8] %vm1312, %v1214
        %1869 = vst.msk [vmem:[%s190 + $0xe] sm:$0x8] %vm1312, %v1216
        %1870 = vst.msk [vmem:[%s190 + $0x10] sm:$0x8] %vm1312, %v1218
        %1871 = vst.msk [vmem:[%s190 + $0x12] sm:$0x8] %vm1312, %v1220
        %1872 = vst.msk [vmem:[%s190 + $0x14] sm:$0x8] %vm1312, %v1222
        %1873 = vst.msk [vmem:[%s190 + $0x16] sm:$0x8] %vm1312, %v1224
        %1874 = vst.msk [vmem:[%s190 + $0x18] sm:$0x8] %vm1312, %v1226
        %1875 = vst.msk [vmem:[%s190 + $0x1a] sm:$0x8] %vm1312, %v1228
        %1876 = vst.msk [vmem:[%s190 + $0x1c] sm:$0x8] %vm1312, %v1230
        %1877 = vst.msk [vmem:[%s190 - $0x3] sm:$0x10] %vm1377, %v1265
        %1878 = vst.msk [vmem:[%s190 - $0x1] sm:$0x10] %vm1377, %v1267
        %1879 = vst.msk [vmem:[%s190 + $0x1] sm:$0x10] %vm1377, %v1269
        %1880 = vst.msk [vmem:[%s190 + $0x3] sm:$0x10] %vm1377, %v1271
        %1881 = vst.msk [vmem:[%s190 + $0x5] sm:$0x10] %vm1377, %v1273
        %1882 = vst.msk [vmem:[%s190 + $0x7] sm:$0x10] %vm1377, %v1275
        %1883 = vst.msk [vmem:[%s190 + $0x9] sm:$0x10] %vm1377, %v1277
        %1884 = vst.msk [vmem:[%s190 + $0xb] sm:$0x10] %vm1377, %v1279
        %1885 = vst.msk [vmem:[%s190 + $0xd] sm:$0x10] %vm1377, %v1281
        %1886 = vst.msk [vmem:[%s190 + $0xf] sm:$0x10] %vm1377, %v1283
        %1887 = vst.msk [vmem:[%s190 + $0x11] sm:$0x10] %vm1377, %v1285
        %1888 = vst.msk [vmem:[%s190 + $0x13] sm:$0x10] %vm1377, %v1287
        %1889 = vst.msk [vmem:[%s190 + $0x15] sm:$0x10] %vm1377, %v1289
        %1890 = vst.msk [vmem:[%s190 + $0x17] sm:$0x10] %vm1377, %v1291
        %1891 = vst.msk [vmem:[%s190 + $0x19] sm:$0x10] %vm1377, %v1293
        %1892 = vst.msk [vmem:[%s190 + $0x1b] sm:$0x10] %vm1377, %v1295
        %1893 = vst.msk [vmem:[%s190 - $0x4] sm:$0x20] %vm1442, %v1330
        %1894 = vst.msk [vmem:[%s190 - $0x2] sm:$0x20] %vm1442, %v1332
        %1895 = vst.msk [vmem:[%s190] sm:$0x20] %vm1442, %v1334
        %1896 = vst.msk [vmem:[%s190 + $0x2] sm:$0x20] %vm1442, %v1336
        %1897 = vst.msk [vmem:[%s190 + $0x4] sm:$0x20] %vm1442, %v1338
        %1898 = vst.msk [vmem:[%s190 + $0x6] sm:$0x20] %vm1442, %v1340
        %1899 = vst.msk [vmem:[%s190 + $0x8] sm:$0x20] %vm1442, %v1342
        %1900 = vst.msk [vmem:[%s190 + $0xa] sm:$0x20] %vm1442, %v1344
        %1901 = vst.msk [vmem:[%s190 + $0xc] sm:$0x20] %vm1442, %v1346
        %1902 = vst.msk [vmem:[%s190 + $0xe] sm:$0x20] %vm1442, %v1348
        %1903 = vst.msk [vmem:[%s190 + $0x10] sm:$0x20] %vm1442, %v1350
        %1904 = vst.msk [vmem:[%s190 + $0x12] sm:$0x20] %vm1442, %v1352
        %1905 = vst.msk [vmem:[%s190 + $0x14] sm:$0x20] %vm1442, %v1354
        %1906 = vst.msk [vmem:[%s190 + $0x16] sm:$0x20] %vm1442, %v1356
        %1907 = vst.msk [vmem:[%s190 + $0x18] sm:$0x20] %vm1442, %v1358
        %1908 = vst.msk [vmem:[%s190 + $0x1a] sm:$0x20] %vm1442, %v1360
        %1909 = vst.msk [vmem:[%s190 - $0x5] sm:$0x40] %vm1507, %v1395
        %1910 = vst.msk [vmem:[%s190 - $0x3] sm:$0x40] %vm1507, %v1397
        %1911 = vst.msk [vmem:[%s190 - $0x1] sm:$0x40] %vm1507, %v1399
        %1912 = vst.msk [vmem:[%s190 + $0x1] sm:$0x40] %vm1507, %v1401
        %1913 = vst.msk [vmem:[%s190 + $0x3] sm:$0x40] %vm1507, %v1403
        %1914 = vst.msk [vmem:[%s190 + $0x5] sm:$0x40] %vm1507, %v1405
        %1915 = vst.msk [vmem:[%s190 + $0x7] sm:$0x40] %vm1507, %v1407
        %1916 = vst.msk [vmem:[%s190 + $0x9] sm:$0x40] %vm1507, %v1409
        %1917 = vst.msk [vmem:[%s190 + $0xb] sm:$0x40] %vm1507, %v1411
        %1918 = vst.msk [vmem:[%s190 + $0xd] sm:$0x40] %vm1507, %v1413
        %1919 = vst.msk [vmem:[%s190 + $0xf] sm:$0x40] %vm1507, %v1415
        %1920 = vst.msk [vmem:[%s190 + $0x11] sm:$0x40] %vm1507, %v1417
        %1921 = vst.msk [vmem:[%s190 + $0x13] sm:$0x40] %vm1507, %v1419
        %1922 = vst.msk [vmem:[%s190 + $0x15] sm:$0x40] %vm1507, %v1421
        %1923 = vst.msk [vmem:[%s190 + $0x17] sm:$0x40] %vm1507, %v1423
        %1924 = vst.msk [vmem:[%s190 + $0x19] sm:$0x40] %vm1507, %v1425
        %1925 = vst.msk [vmem:[%s190 - $0x6] sm:$0x80] %vm1572, %v1460
        %1926 = vst.msk [vmem:[%s190 - $0x4] sm:$0x80] %vm1572, %v1462
        %1927 = vst.msk [vmem:[%s190 - $0x2] sm:$0x80] %vm1572, %v1464
        %1928 = vst.msk [vmem:[%s190] sm:$0x80] %vm1572, %v1466
        %1929 = vst.msk [vmem:[%s190 + $0x2] sm:$0x80] %vm1572, %v1468
        %1930 = vst.msk [vmem:[%s190 + $0x4] sm:$0x80] %vm1572, %v1470
        %1931 = vst.msk [vmem:[%s190 + $0x6] sm:$0x80] %vm1572, %v1472
        %1932 = vst.msk [vmem:[%s190 + $0x8] sm:$0x80] %vm1572, %v1474
        %1933 = vst.msk [vmem:[%s190 + $0xa] sm:$0x80] %vm1572, %v1476
        %1934 = vst.msk [vmem:[%s190 + $0xc] sm:$0x80] %vm1572, %v1478
        %1935 = vst.msk [vmem:[%s190 + $0xe] sm:$0x80] %vm1572, %v1480
        %1936 = vst.msk [vmem:[%s190 + $0x10] sm:$0x80] %vm1572, %v1482
        %1937 = vst.msk [vmem:[%s190 + $0x12] sm:$0x80] %vm1572, %v1484
        %1938 = vst.msk [vmem:[%s190 + $0x14] sm:$0x80] %vm1572, %v1486
        %1939 = vst.msk [vmem:[%s190 + $0x16] sm:$0x80] %vm1572, %v1488
        %1940 = vst.msk [vmem:[%s190 + $0x18] sm:$0x80] %vm1572, %v1490
        %s1941 = sand.u32 %s109, 1
        %s1942 = scalar_lea.sflag [#allocation3], %s1941
        %s1943 = sand.u32 %s109, 1
        %s1944 = smul.addr %s1943, 32
        %s1945 = scalar_lea.vmem [#allocation2], %s1944
        // Predicated region
        $region33: #{tpu_custom_call.1} parent=31 // pred_check
          %p1946 = pneg %p119
        $region34: #{tpu_custom_call.1} parent=31 // pred_check_branch
          %1948 = sbr.rel (%p1946) target = $region36
        $region35: #{tpu_custom_call.1} parent=31 // pred_region
          %s1949 = smul.u32 16, %s22
          %s1951 = ssub.s32 512, 512
          %1952 = vsyncadd %s1942, %s1951
          %s1953 = smul.addr %s21, 16
          %s1954 = sadd.s32 %s1949, %s1953
          %s1955 = smul.addr %s1954, 32
          %s1956 = scalar_lea.hbm %s3, %s1955
          %s1957 = sshll.u32 %s1945, 4
          %s1958 = int_to_ptr.vmem [resolvable:$true] %s1957
          %1963 = dma.vmem_to_hbm [thread:$0]  %s1958, 512, %s1956, %s1942, 32, 32, 2
        $region36: #{tpu_custom_call.1} parent=31 // pred_fallthru
          _
      $region32: #{tpu_custom_call.1} parent=5 // pred_fallthru
        _
      %p1964 = scmp.le.s32.totalorder 2, %s12
      // Predicated region
      $region37: #{tpu_custom_call.1} parent=5 // pred_check
        %p1965 = pneg %p1964
      $region38: #{tpu_custom_call.1} parent=5 // pred_check_branch
        %1967 = sbr.rel (%p1965) target = $region40
      $region39: #{tpu_custom_call.1} parent=5 // pred_region
        %s1968 = ssub.s32 %s12, 2
        // Predicated region
        $region41: #{tpu_custom_call.1} parent=39 // pred_check
          %p1969 = pneg %p125
        $region42: #{tpu_custom_call.1} parent=39 // pred_check_branch
          %1971 = sbr.rel (%p1969) target = $region44
        $region43: #{tpu_custom_call.1} parent=39 // pred_region
          %s1972 = sand.u32 %s110, 1
          %s1973 = scalar_lea.sflag [#allocation3], %s1972
          %s1974 = sand.u32 %s110, 1
          %s1975 = smul.addr %s1974, 32
          %s1976 = scalar_lea.vmem [#allocation2], %s1975
          %1977 = dma.done %s1973, 512
        $region44: #{tpu_custom_call.1} parent=39 // pred_fallthru
          _
      $region40: #{tpu_custom_call.1} parent=5 // pred_fallthru
        _
    $region6: #{tpu_custom_call.1} parent=1 // loop_footer
      %s16 = sadd.s32 1, %s12
    $region7: #{tpu_custom_call.1} parent=1 // loop_footer_branch
      %11 = sbr.rel target = $region3
    $region8: #{tpu_custom_call.1} parent=1 // loop_exit
      _
    %1978 = vsyncpa [#allocation3], 1
    %s1979 = scalar_lea.sflag [#allocation3], 1
    %1980 = vsyncpa %s1979, 1

</llo_original>
